<compile_context>
chip_gen: v7x
topology: tpu7x:2x2x1
jax: 0.10.0
libtpu: 0.0.40
codegen_flags: <defaults>
</compile_context>

<pallas_src>
import functools

import jax
import jax.numpy as jnp
from jax.experimental import pallas as pl
from jax.experimental.pallas import tpu as pltpu

_HIGHEST = jax.lax.Precision.HIGHEST


def _silu(v):
    return v * jax.nn.sigmoid(v)


def ve_precond_kernel(sigma_ref,     # (B,)        f32 in SMEM (whole array)
                      x_ref,         # (1, C, THW) native dtype — lane-dense pixel tile
                      bias1_ref,     # (1, HID, 1) f32 — b1 + noise embedding (per sample)
                      w1t_ref,       # (HID, C)    f32 — W1^T
                      w2t_ref,       # (C, HID)    f32 — W2^T
                      b2_ref,        # (C, 1)      f32
                      out_ref,       # (1, C, THW) f32
                      *, chunk, hidden_bf16):
    b = pl.program_id(0)
    sigma = sigma_ref[b]                                     # per-sample scalar (c_out)

    w1t = w1t_ref[...]                                       # (HID, C)
    w2t = w2t_ref[...]                                       # (C, HID)
    b1 = bias1_ref[0]                                        # (HID, 1)
    b2 = b2_ref[...]                                         # (C, 1)
    if hidden_bf16:                                          # v6e/v7x VPU/EUP refinement
        w1t_h = w1t.astype(jnp.bfloat16)
        w2t_h = w2t.astype(jnp.bfloat16)
        b1_h = b1.astype(jnp.bfloat16)

    def compute(x_native):
        # stand-in inner model F(c_in * x, c_noise), computed transposed so HW
        # stays on the lane axis:  h^T = silu(W1^T x^T + (b1+emb)^T) ; F^T = W2^T h^T + b2^T
        x = x_native.astype(jnp.float32)                     # cast on-chip, not in wrapper
        if hidden_bf16:
            h = _silu(jnp.dot(w1t_h, x.astype(jnp.bfloat16),
                              preferred_element_type=jnp.bfloat16) + b1_h)
            f = jnp.dot(w2t_h, h, preferred_element_type=jnp.float32) + b2
        else:
            h = _silu(jnp.dot(w1t, x, preferred_element_type=jnp.float32,
                              precision=_HIGHEST) + b1)      # (HID, chunk)
            f = jnp.dot(w2t, h, preferred_element_type=jnp.float32,
                        precision=_HIGHEST) + b2             # (C, chunk)
        # D_x = c_skip * x + c_out * F_x   (c_skip = 1, c_out = sigma)
        return x + sigma * f

    thw = x_ref.shape[-1]
    if thw <= chunk or thw % chunk != 0:
        # Small / irregular tile: single shot.
        out_ref[0] = compute(x_ref[0])
    else:
        # Large tile: chunk the compute so the (HID, chunk) hidden stays small
        # (no VMEM spill of MXU results) while the DMA tile remains big.
        n_chunks = thw // chunk

        def body(i, carry):
            off = pl.multiple_of(i * chunk, 128)
            xs = x_ref[0, :, pl.ds(off, chunk)]
            out_ref[0, :, pl.ds(off, chunk)] = compute(xs)
            return carry

        jax.lax.fori_loop(0, n_chunks, body, 0, unroll=n_chunks <= 16)


def _pick_hw_tile(hw, cap=16384):
    """Largest power-of-2 multiple of 128 that divides hw, capped.  Falls back to
    the whole (un-tiled) spatial axis if hw is not a multiple of 128."""
    if hw % 128 != 0:
        return hw
    t = 128
    while t * 2 <= min(hw, cap) and hw % (t * 2) == 0:
        t *= 2
    return t


def _vmem_limit_bytes(thw, c, hid, x_itemsize, chunk):
    """Scoped-VMEM budget accounting for the C=4 -> 8 sublane padding on the
    x/out blocks (they occupy 8*THW words, not 4*THW), double buffering, and the
    chunked hidden intermediate, with 2x headroom."""
    pad_rows_bytes = 8 * 4                                   # padded sublanes * 4B (upper bound)
    blocks = 2 * pad_rows_bytes * thw                        # x double-buffer (>= native dtype)
    blocks += 2 * pad_rows_bytes * thw                       # out double-buffer (f32)
    hidden = 2 * hid * min(thw, chunk) * 4                   # hidden + f intermediates
    est = 2 * (blocks + hidden) + (1 << 20)
    return int(min(max(est, 32 << 20), 48 << 20))


def ve_precond(x_nchw, sigma, params, *, hw_tile_cap=16384, chunk=1024,
               hidden_bf16=False):
    """x_nchw: (B, C, H, W) any float dtype ; sigma: (B,) ; returns (B, C, H, W) f32."""
    B, C, H, W = x_nchw.shape
    HW = H * W
    we1, be1, we2, be2, w1, b1, w2, b2 = params
    HID = w1.shape[1]

    # NCHW -> (B, C, HW): free reshape, no transpose, NO dtype upcast (done in-kernel).
    x_flat = x_nchw.reshape(B, C, HW)
    sigma = sigma.astype(jnp.float32).reshape(-1)

    # --- VEPrecond coefficients + hoisted noise-embedding MLP (tiny, once per batch)
    c_noise = jnp.log(0.5 * sigma).reshape(B, 1)             # c_skip=1, c_out=sigma, c_in=1
    emb = _silu(c_noise * we1 + be1)                         # (B, HID)
    emb = _silu(jnp.dot(emb, we2, precision=_HIGHEST) + be2) # (B, HID)
    bias1 = (b1 + emb).reshape(B, HID, 1)                    # folded layer-1 bias, sublane-major

    # Transposed weights so the kernel's matmuls keep HW on the lane axis.
    w1t = jnp.transpose(w1)                                  # (HID, C)
    w2t = jnp.transpose(w2)                                  # (C, HID)
    b2t = b2.reshape(C, 1)                                   # (C, 1)

    THW = _pick_hw_tile(HW, hw_tile_cap)
    grid = (B, HW // THW)                                    # both axes fully parallel

    kernel = functools.partial(ve_precond_kernel, chunk=chunk, hidden_bf16=hidden_bf16)

    out_flat = pl.pallas_call(
        kernel,
        out_shape=jax.ShapeDtypeStruct((B, C, HW), jnp.float32),
        grid=grid,
        in_specs=[
            pl.BlockSpec(memory_space=pltpu.MemorySpace.SMEM),          # sigma (whole array)
            pl.BlockSpec((1, C, THW), lambda b, t: (b, 0, t)),          # x pixel tile (native dtype)
            pl.BlockSpec((1, HID, 1), lambda b, t: (b, 0, 0)),          # b1 + emb (per sample)
            pl.BlockSpec((HID, C), lambda b, t: (0, 0)),                # W1^T
            pl.BlockSpec((C, HID), lambda b, t: (0, 0)),                # W2^T
            pl.BlockSpec((C, 1), lambda b, t: (0, 0)),                  # b2^T
        ],
        out_specs=pl.BlockSpec((1, C, THW), lambda b, t: (b, 0, t)),
        compiler_params=pltpu.CompilerParams(
            dimension_semantics=("parallel", "parallel"),               # no reduction axes
            vmem_limit_bytes=_vmem_limit_bytes(THW, C, HID,
                                               x_flat.dtype.itemsize, chunk)),
    )(sigma, x_flat, bias1, w1t, w2t, b2t)

    # (B, C, HW) -> NCHW: free reshape.
    return out_flat.reshape(B, C, H, W)


def ve_precond_reference(x_nchw, sigma, params):
    """Pure-JAX reference mirroring the PyTorch forward with the same stand-in model."""
    we1, be1, we2, be2, w1, b1, w2, b2 = params
    B, C, H, W = x_nchw.shape
    x = x_nchw.astype(jnp.float32)
    s = sigma.astype(jnp.float32).reshape(-1, 1, 1, 1)                  # (B,1,1,1)
    c_noise = jnp.log(0.5 * s).reshape(B, 1)                            # flattened per-sample

    emb = _silu(c_noise * we1 + be1)
    emb = _silu(jnp.dot(emb, we2, precision=_HIGHEST) + be2)            # (B, HID)

    xf = jnp.transpose(x, (0, 2, 3, 1)).reshape(B, H * W, C)
    h = _silu(jnp.dot(xf, w1, precision=_HIGHEST) + b1 + emb[:, None, :])
    f_x = jnp.dot(h, w2, precision=_HIGHEST) + b2                       # (B, HW, C)

    d = xf + s.reshape(B, 1, 1) * f_x                                   # c_skip*x + c_out*F_x
    return jnp.transpose(d.reshape(B, H, W, C), (0, 3, 1, 2))


def init_params(key, img_channels, hidden):
    ks = jax.random.split(key, 8)
    scale = 0.1
    we1 = scale * jax.random.normal(ks[0], (1, hidden), jnp.float32)
    be1 = scale * jax.random.normal(ks[1], (1, hidden), jnp.float32)
    we2 = scale * jax.random.normal(ks[2], (hidden, hidden), jnp.float32)
    be2 = scale * jax.random.normal(ks[3], (1, hidden), jnp.float32)
    w1 = scale * jax.random.normal(ks[4], (img_channels, hidden), jnp.float32)
    b1 = scale * jax.random.normal(ks[5], (1, hidden), jnp.float32)
    w2 = scale * jax.random.normal(ks[6], (hidden, img_channels), jnp.float32)
    b2 = scale * jax.random.normal(ks[7], (1, img_channels), jnp.float32)
    return (we1, be1, we2, be2, w1, b1, w2, b2)


if __name__ == "__main__":
    # Small shapes consistent with VEPrecond(img_resolution=16, img_channels=4, label_dim=0)
    B, C, H, W = 2, 4, 16, 16
    HID = 32

    key = jax.random.PRNGKey(0)
    kx, ks, kp = jax.random.split(key, 3)
    x = jax.random.normal(kx, (B, C, H, W), jnp.float32)
    # sigma within [sigma_min=0.02, sigma_max=100.0]
    sigma = jax.random.uniform(ks, (B,), jnp.float32, minval=0.5, maxval=5.0)
    params = init_params(kp, C, HID)

    out = ve_precond(x, sigma, params)
    out = jax.block_until_ready(out)

    ref = ve_precond_reference(x, sigma, params)
    assert out.shape == (B, C, H, W)
    assert out.dtype == jnp.float32
    assert jnp.allclose(out, ref, rtol=1e-4, atol=1e-4), "mismatch vs reference"

    print("KERNEL_OK")
</pallas_src>

<mosaic_0001>
module attributes {stable_mosaic.version = 11 : i64} {
  func.func @ve_precond_kernel(%arg0: i32, %arg1: i32, %arg2: memref<2xf32, #tpu.memory_space<smem>>, %arg3: memref<1x4x256xf32, #tpu.memory_space<vmem>>, %arg4: memref<1x32x1xf32, #tpu.memory_space<vmem>>, %arg5: memref<32x4xf32, #tpu.memory_space<vmem>>, %arg6: memref<4x32xf32, #tpu.memory_space<vmem>>, %arg7: memref<4x1xf32, #tpu.memory_space<vmem>>, %arg8: memref<1x4x256xf32, #tpu.memory_space<vmem>>) attributes {dimension_semantics = [#tpu.dimension_semantics<parallel>, #tpu.dimension_semantics<parallel>], iteration_bounds = array<i64: 2, 1>, scalar_prefetch = 0 : i64, scratch_operands = 0 : i64, tpu.core_type = #tpu.core_type<tc>, window_params = [{transform_indices = @transform_0, window_bounds = array<i64: 2>}, {transform_indices = @transform_1, window_bounds = array<i64: 1, 4, 256>}, {transform_indices = @transform_2, window_bounds = array<i64: 1, 32, 1>}, {pipeline_mode = #tpu.pipeline_mode<synchronous>, transform_indices = @transform_3, window_bounds = array<i64: 32, 4>}, {pipeline_mode = #tpu.pipeline_mode<synchronous>, transform_indices = @transform_4, window_bounds = array<i64: 4, 32>}, {pipeline_mode = #tpu.pipeline_mode<synchronous>, transform_indices = @transform_5, window_bounds = array<i64: 4, 1>}, {transform_indices = @transform_6, window_bounds = array<i64: 1, 4, 256>}]} {
    %0 = arith.index_cast %arg0 : i32 to index
    %1 = memref.load %arg2[%0] : memref<2xf32, #tpu.memory_space<smem>>
    %c0 = arith.constant 0 : index
    %c0_0 = arith.constant 0 : index
    %2 = vector.load %arg5[%c0, %c0_0] : memref<32x4xf32, #tpu.memory_space<vmem>>, vector<32x4xf32>
    %c0_1 = arith.constant 0 : index
    %c0_2 = arith.constant 0 : index
    %3 = vector.load %arg6[%c0_1, %c0_2] : memref<4x32xf32, #tpu.memory_space<vmem>>, vector<4x32xf32>
    %c0_3 = arith.constant 0 : index
    %c0_4 = arith.constant 0 : index
    %c0_5 = arith.constant 0 : index
    %4 = vector.load %arg4[%c0_3, %c0_4, %c0_5] : memref<1x32x1xf32, #tpu.memory_space<vmem>>, vector<1x32x1xf32>
    %5 = vector.shape_cast %4 : vector<1x32x1xf32> to vector<32x1xf32>
    %c0_6 = arith.constant 0 : index
    %c0_7 = arith.constant 0 : index
    %6 = vector.load %arg7[%c0_6, %c0_7] : memref<4x1xf32, #tpu.memory_space<vmem>>, vector<4x1xf32>
    %c0_8 = arith.constant 0 : index
    %c0_9 = arith.constant 0 : index
    %c0_10 = arith.constant 0 : index
    %7 = vector.load %arg3[%c0_8, %c0_9, %c0_10] : memref<1x4x256xf32, #tpu.memory_space<vmem>>, vector<1x4x256xf32>
    %8 = vector.shape_cast %7 : vector<1x4x256xf32> to vector<4x256xf32>
    %cst = arith.constant dense<0.000000e+00> : vector<32x256xf32>
    %9 = tpu.matmul %2, %8, %cst {dimension_numbers = #tpu.dot_dimension_numbers<[1], [0], [0], [1], [0, 0, 1, 1], [], []>, precision = #tpu.contract_precision<fp32>} : vector<32x4xf32>, vector<4x256xf32>, vector<32x256xf32> -> vector<32x256xf32>
    %10 = vector.broadcast %5 : vector<32x1xf32> to vector<32x256xf32>
    %11 = arith.addf %9, %10 : vector<32x256xf32>
    %12 = arith.negf %11 : vector<32x256xf32>
    %13 = math.exp %12 : vector<32x256xf32>
    %cst_11 = arith.constant 1.000000e+00 : f32
    %14 = vector.broadcast %cst_11 : f32 to vector<32x256xf32>
    %15 = arith.addf %14, %13 : vector<32x256xf32>
    %16 = arith.divf %14, %15 : vector<32x256xf32>
    %17 = arith.mulf %11, %16 : vector<32x256xf32>
    %cst_12 = arith.constant dense<0.000000e+00> : vector<4x256xf32>
    %18 = tpu.matmul %3, %17, %cst_12 {dimension_numbers = #tpu.dot_dimension_numbers<[1], [0], [0], [1], [0, 0, 1, 1], [], []>, precision = #tpu.contract_precision<fp32>} : vector<4x32xf32>, vector<32x256xf32>, vector<4x256xf32> -> vector<4x256xf32>
    %19 = vector.broadcast %6 : vector<4x1xf32> to vector<4x256xf32>
    %20 = arith.addf %18, %19 : vector<4x256xf32>
    %21 = vector.broadcast %1 : f32 to vector<4x256xf32>
    %22 = arith.mulf %21, %20 : vector<4x256xf32>
    %23 = arith.addf %8, %22 : vector<4x256xf32>
    %c0_13 = arith.constant 0 : index
    %c0_14 = arith.constant 0 : index
    %c0_15 = arith.constant 0 : index
    %24 = vector.load %arg8[%c0_13, %c0_14, %c0_15] : memref<1x4x256xf32, #tpu.memory_space<vmem>>, vector<1x4x256xf32>
    %25 = vector.shape_cast %24 : vector<1x4x256xf32> to vector<4x256xf32>
    %26 = vector.shape_cast %23 : vector<4x256xf32> to vector<1x4x256xf32>
    tpu.vector_store %arg8[%c0_13, %c0_14, %c0_15], %26 {strides = array<i32>} : memref<1x4x256xf32, #tpu.memory_space<vmem>>, vector<1x4x256xf32>,
    return
  }
  func.func @transform_0(%arg0: i32, %arg1: i32) -> i32 {
    %c0_i32 = arith.constant 0 : i32
    %c0_i32_0 = arith.constant 0 : i32
    return %c0_i32 : i32
  }
  func.func @transform_1(%arg0: i32, %arg1: i32) -> (i32, i32, i32) {
    %c0_i32 = arith.constant 0 : i32
    %c0_i32_0 = arith.constant 0 : i32
    return %arg0, %c0_i32, %arg1 : i32, i32, i32
  }
  func.func @transform_2(%arg0: i32, %arg1: i32) -> (i32, i32, i32) {
    %c0_i32 = arith.constant 0 : i32
    %c0_i32_0 = arith.constant 0 : i32
    %c0_i32_1 = arith.constant 0 : i32
    return %arg0, %c0_i32, %c0_i32_0 : i32, i32, i32
  }
  func.func @transform_3(%arg0: i32, %arg1: i32) -> (i32, i32) {
    %c0_i32 = arith.constant 0 : i32
    %c0_i32_0 = arith.constant 0 : i32
    %c0_i32_1 = arith.constant 0 : i32
    return %c0_i32, %c0_i32_0 : i32, i32
  }
  func.func @transform_4(%arg0: i32, %arg1: i32) -> (i32, i32) {
    %c0_i32 = arith.constant 0 : i32
    %c0_i32_0 = arith.constant 0 : i32
    %c0_i32_1 = arith.constant 0 : i32
    return %c0_i32, %c0_i32_0 : i32, i32
  }
  func.func @transform_5(%arg0: i32, %arg1: i32) -> (i32, i32) {
    %c0_i32 = arith.constant 0 : i32
    %c0_i32_0 = arith.constant 0 : i32
    %c0_i32_1 = arith.constant 0 : i32
    return %c0_i32, %c0_i32_0 : i32, i32
  }
  func.func @transform_6(%arg0: i32, %arg1: i32) -> (i32, i32, i32) {
    %c0_i32 = arith.constant 0 : i32
    %c0_i32_0 = arith.constant 0 : i32
    return %arg0, %c0_i32, %arg1 : i32, i32, i32
  }
}

</mosaic_0001>

<llo_original>
// kernel: tpu_custom_call.1
$region0: #{tpu_custom_call.1}
  #allocation0 [shape = 'u32[]', space=smem, size = 0x4, offset = 0x4, fixed_abs, tag = 'smem constant byte address 0x4 - core index']
  #allocation1 [shape = 'u32[144,128]{1,0:T(1,128)}', space=vmem, size = 0x12000, scoped, tag = 'internal scratch']
  %s0 = inlined_call_operand.vmem [shape: f32[2], index: 0, kind: input, shape index: {}]
  %s1 = inlined_call_operand.vmem [shape: f32[2,4,256], index: 1, kind: input, shape index: {}]
  %s2 = inlined_call_operand.vmem [shape: f32[2,32,1], index: 2, kind: input, shape index: {}]
  %s3 = inlined_call_operand.vmem [shape: f32[32,4], index: 3, kind: input, shape index: {}]
  %s4 = inlined_call_operand.vmem [shape: f32[4,32], index: 4, kind: input, shape index: {}]
  %s5 = inlined_call_operand.vmem [shape: f32[4,1], index: 5, kind: input, shape index: {}]
  %s6 = inlined_call_operand.hbm [shape: f32[2,4,256], index: 6, kind: output, shape index: {}]
  %s7 = sld [smem:[#allocation0]]
  $region61: #{tpu_custom_call.1} parent=0
    _
  %s9 = ssub.s32 1, %s7
  %s10 = scalar_select 0, %s9, %s7
  $region1: #{tpu_custom_call.1} parent=0
    #allocation2 [shape = 'u8[512]{0}', space=smem, size = 0x200, scoped, tag = 'input window, operand 0, single buffered']
    #allocation3 [shape = 's32[2]{0}', space=sflag, size = 0x8, scoped, tag = 'scoped memory for tpu_custom_call.1']
    #allocation4 [shape = 's32[2]{0}', space=sflag, size = 0x8, scoped, tag = 'scoped memory for tpu_custom_call.1']
    #allocation5 [shape = 'u8[8192]{0}', space=vmem, size = 0x2000, scoped, tag = 'output window, operand 0']
    %11 = vsyncpa [#allocation4], 0
    %12 = vsyncpa [#allocation3], 0
    %s13 = scalar_lea.sflag [#allocation3], 1
    %14 = vsyncpa %s13, 0
    loop: start=0, step=1, limit=4
    $region2: #{tpu_custom_call.1} parent=1 // loop_pre_header
      _
    $region3: #{tpu_custom_call.1} parent=1 // loop_header
      %s16 = sphi 0, %s20
      %p17 = scmp.ge.s32.totalorder %s16, 4
      %s23 = sphi 0, %s35
      %s24 = sphi 0, %s31
      %s25 = sphi 0, %s23
      %s26 = sphi 0, %s24
      %s27 = sphi 0, %s25
      %s28 = sphi 0, %s26
      %s36 = sphi 0, %s36
      %s38 = sphi 0, %s36
      %s39 = sphi 0, %s38
      %s53 = sphi 0, %s39
      %s61 = sphi 0, %s63
      %s64 = sphi 0, %s61
      %s65 = sphi 0, %s64
      %s81 = sphi 0, %s65
      %s87 = sphi 0, %s89
      %s90 = sphi 0, %s87
      %s91 = sphi 0, %s90
      %s107 = sphi 0, %s91
      %s111 = sphi 0, %s111
      %s113 = sphi 0, %s111
      %s114 = sphi 0, %s113
      %s128 = sphi 0, %s114
      %s132 = sphi 0, %s132
      %s134 = sphi 0, %s132
      %s135 = sphi 0, %s134
      %s149 = sphi 0, %s135
      %s153 = sphi 0, %s153
      %s155 = sphi 0, %s153
      %s156 = sphi 0, %s155
      %s170 = sphi 0, %s156
      %s178 = sphi 0, %s180
      %s181 = sphi 0, %s178
      %s182 = sphi 0, %s181
      %s198 = sphi 0, %s182
    $region4: #{tpu_custom_call.1} parent=1 // loop_header_branch
      %19 = sbr.rel (%p17) target = $region8
    $region5: #{tpu_custom_call.1} parent=1 // loop_body
      %s21 = ssub.s32 %s16, 1
      %s22 = ssub.s32 %s16, 2
      %s29 = sadd.s32 1, %s24
      %p30 = scmp.ge.s32.totalorder %s29, 1
      %s31 = scalar_select %p30, 0, %s29
      %s32 = sadd.s32 1, %s23
      %s33 = scalar_select %p30, %s32, %s23
      %p34 = scmp.ge.s32.totalorder %s33, 2
      %s35 = scalar_select %p34, 0, %s33
      %s37 = sadd.s32 %s36, 1
      %p40 = scmp.eq.s32.totalorder %s16, 1
      %p41 = scmp.ne.s32.totalorder %s36, %s38
      %p42 = scmp.eq.s32.totalorder %s16, 0
      %p43 = por %p41, %p42
      %p44 = scmp.ne.s32.totalorder %s36, %s38
      %p45 = scmp.eq.s32.totalorder %s21, 1
      %p46 = por %p44, %p45
      %p47 = scmp.ne.s32.totalorder %s38, %s39
      %p48 = scmp.eq.s32.totalorder %s21, 0
      %p49 = por %p47, %p48
      %p50 = scmp.ne.s32.totalorder %s38, %s39
      %p51 = scmp.eq.s32.totalorder %s22, 1
      %p52 = por %p50, %p51
      %p54 = scmp.ne.s32.totalorder %s39, %s53
      %p55 = scmp.eq.s32.totalorder %s22, 0
      %p56 = por %p54, %p55
      %s57 = ssub.s32 %s23, %s35
      %s58 = ssub.s32 %s24, %s31
      %s59 = sor.u32 %s57, %s58
      %p60 = scmp.eq.s32.totalorder %s59, 0
      %s62 = sadd.s32 %s61, 1
      %s63 = scalar_select %p60, %s61, %s62
      %p66 = pneg %p60
      %p67 = scmp.eq.s32.totalorder %s16, 1
      %p68 = por %p66, %p67
      %p69 = scmp.ne.s32.totalorder %s61, %s64
      %p70 = scmp.eq.s32.totalorder %s16, 0
      %p71 = por %p69, %p70
      %p72 = scmp.ne.s32.totalorder %s61, %s64
      %p73 = scmp.eq.s32.totalorder %s21, 1
      %p74 = por %p72, %p73
      %p75 = scmp.ne.s32.totalorder %s64, %s65
      %p76 = scmp.eq.s32.totalorder %s21, 0
      %p77 = por %p75, %p76
      %p78 = scmp.ne.s32.totalorder %s64, %s65
      %p79 = scmp.eq.s32.totalorder %s22, 1
      %p80 = por %p78, %p79
      %p82 = scmp.ne.s32.totalorder %s65, %s81
      %p83 = scmp.eq.s32.totalorder %s22, 0
      %p84 = por %p82, %p83
      %s85 = ssub.s32 %s23, %s35
      %p86 = scmp.eq.s32.totalorder %s85, 0
      %s88 = sadd.s32 %s87, 1
      %s89 = scalar_select %p86, %s87, %s88
      %p92 = pneg %p86
      %p93 = scmp.eq.s32.totalorder %s16, 1
      %p94 = por %p92, %p93
      %p95 = scmp.ne.s32.totalorder %s87, %s90
      %p96 = scmp.eq.s32.totalorder %s16, 0
      %p97 = por %p95, %p96
      %p98 = scmp.ne.s32.totalorder %s87, %s90
      %p99 = scmp.eq.s32.totalorder %s21, 1
      %p100 = por %p98, %p99
      %p101 = scmp.ne.s32.totalorder %s90, %s91
      %p102 = scmp.eq.s32.totalorder %s21, 0
      %p103 = por %p101, %p102
      %p104 = scmp.ne.s32.totalorder %s90, %s91
      %p105 = scmp.eq.s32.totalorder %s22, 1
      %p106 = por %p104, %p105
      %p108 = scmp.ne.s32.totalorder %s91, %s107
      %p109 = scmp.eq.s32.totalorder %s22, 0
      %p110 = por %p108, %p109
      %s112 = sadd.s32 %s111, 1
      %p115 = scmp.eq.s32.totalorder %s16, 1
      %p116 = scmp.ne.s32.totalorder %s111, %s113
      %p117 = scmp.eq.s32.totalorder %s16, 0
      %p118 = por %p116, %p117
      %p119 = scmp.ne.s32.totalorder %s111, %s113
      %p120 = scmp.eq.s32.totalorder %s21, 1
      %p121 = por %p119, %p120
      %p122 = scmp.ne.s32.totalorder %s113, %s114
      %p123 = scmp.eq.s32.totalorder %s21, 0
      %p124 = por %p122, %p123
      %p125 = scmp.ne.s32.totalorder %s113, %s114
      %p126 = scmp.eq.s32.totalorder %s22, 1
      %p127 = por %p125, %p126
      %p129 = scmp.ne.s32.totalorder %s114, %s128
      %p130 = scmp.eq.s32.totalorder %s22, 0
      %p131 = por %p129, %p130
      %s133 = sadd.s32 %s132, 1
      %p136 = scmp.eq.s32.totalorder %s16, 1
      %p137 = scmp.ne.s32.totalorder %s132, %s134
      %p138 = scmp.eq.s32.totalorder %s16, 0
      %p139 = por %p137, %p138
      %p140 = scmp.ne.s32.totalorder %s132, %s134
      %p141 = scmp.eq.s32.totalorder %s21, 1
      %p142 = por %p140, %p141
      %p143 = scmp.ne.s32.totalorder %s134, %s135
      %p144 = scmp.eq.s32.totalorder %s21, 0
      %p145 = por %p143, %p144
      %p146 = scmp.ne.s32.totalorder %s134, %s135
      %p147 = scmp.eq.s32.totalorder %s22, 1
      %p148 = por %p146, %p147
      %p150 = scmp.ne.s32.totalorder %s135, %s149
      %p151 = scmp.eq.s32.totalorder %s22, 0
      %p152 = por %p150, %p151
      %s154 = sadd.s32 %s153, 1
      %p157 = scmp.eq.s32.totalorder %s16, 1
      %p158 = scmp.ne.s32.totalorder %s153, %s155
      %p159 = scmp.eq.s32.totalorder %s16, 0
      %p160 = por %p158, %p159
      %p161 = scmp.ne.s32.totalorder %s153, %s155
      %p162 = scmp.eq.s32.totalorder %s21, 1
      %p163 = por %p161, %p162
      %p164 = scmp.ne.s32.totalorder %s155, %s156
      %p165 = scmp.eq.s32.totalorder %s21, 0
      %p166 = por %p164, %p165
      %p167 = scmp.ne.s32.totalorder %s155, %s156
      %p168 = scmp.eq.s32.totalorder %s22, 1
      %p169 = por %p167, %p168
      %p171 = scmp.ne.s32.totalorder %s156, %s170
      %p172 = scmp.eq.s32.totalorder %s22, 0
      %p173 = por %p171, %p172
      %s174 = ssub.s32 %s23, %s35
      %s175 = ssub.s32 %s24, %s31
      %s176 = sor.u32 %s174, %s175
      %p177 = scmp.eq.s32.totalorder %s176, 0
      %s179 = sadd.s32 %s178, 1
      %s180 = scalar_select %p177, %s178, %s179
      %p183 = pneg %p177
      %p184 = scmp.eq.s32.totalorder %s16, 1
      %p185 = por %p183, %p184
      %p186 = scmp.ne.s32.totalorder %s178, %s181
      %p187 = scmp.eq.s32.totalorder %s16, 0
      %p188 = por %p186, %p187
      %p189 = scmp.ne.s32.totalorder %s178, %s181
      %p190 = scmp.eq.s32.totalorder %s21, 1
      %p191 = por %p189, %p190
      %p192 = scmp.ne.s32.totalorder %s181, %s182
      %p193 = scmp.eq.s32.totalorder %s21, 0
      %p194 = por %p192, %p193
      %p195 = scmp.ne.s32.totalorder %s181, %s182
      %p196 = scmp.eq.s32.totalorder %s22, 1
      %p197 = por %p195, %p196
      %p199 = scmp.ne.s32.totalorder %s182, %s198
      %p200 = scmp.eq.s32.totalorder %s22, 0
      %p201 = por %p199, %p200
      %p202 = scmp.le.s32.totalorder 1, %s16
      %p203 = scmp.lt.s32.totalorder %s16, 3
      %p204 = pnand %p202, %p203
      %p205 = pneg %p204
      // Predicated region
      $region9: #{tpu_custom_call.1} parent=5 // pred_check
        _
      $region10: #{tpu_custom_call.1} parent=5 // pred_check_branch
        %207 = sbr.rel (%p204) target = $region12
      $region11: #{tpu_custom_call.1} parent=5 // pred_region
        %s208 = ssub.s32 %s16, 1
        // Predicated region
        $region13: #{tpu_custom_call.1} parent=11 // pred_check
          %p209 = pneg %p49
        $region14: #{tpu_custom_call.1} parent=11 // pred_check_branch
          %211 = sbr.rel (%p209) target = $region16
        $region15: #{tpu_custom_call.1} parent=11 // pred_region
          %s213 = ssub.s32 16, 16
          %214 = vsyncadd [#allocation4], %s213
          %s216 = sshll.u32 %s0, 4
          %s217 = int_to_ptr.vmem [resolvable:$true] %s216
          %219 = dma.vmem_to_smem %s217, 16, [#allocation2], [#allocation4]
        $region16: #{tpu_custom_call.1} parent=11 // pred_fallthru
          _
        // Predicated region
        $region17: #{tpu_custom_call.1} parent=11 // pred_check
          %p220 = pneg %p124
        $region18: #{tpu_custom_call.1} parent=11 // pred_check_branch
          %222 = sbr.rel (%p220) target = $region20
        $region19: #{tpu_custom_call.1} parent=11 // pred_region
          _
        $region20: #{tpu_custom_call.1} parent=11 // pred_fallthru
          _
        // Predicated region
        $region21: #{tpu_custom_call.1} parent=11 // pred_check
          %p223 = pneg %p145
        $region22: #{tpu_custom_call.1} parent=11 // pred_check_branch
          %225 = sbr.rel (%p223) target = $region24
        $region23: #{tpu_custom_call.1} parent=11 // pred_region
          _
        $region24: #{tpu_custom_call.1} parent=11 // pred_fallthru
          _
        // Predicated region
        $region25: #{tpu_custom_call.1} parent=11 // pred_check
          %p226 = pneg %p166
        $region26: #{tpu_custom_call.1} parent=11 // pred_check_branch
          %228 = sbr.rel (%p226) target = $region28
        $region27: #{tpu_custom_call.1} parent=11 // pred_region
          _
        $region28: #{tpu_custom_call.1} parent=11 // pred_fallthru
          _
      $region12: #{tpu_custom_call.1} parent=5 // pred_fallthru
        _
      %p229 = scmp.lt.s32.totalorder %s16, 2
      // Predicated region
      $region29: #{tpu_custom_call.1} parent=5 // pred_check
        %p230 = pneg %p229
      $region30: #{tpu_custom_call.1} parent=5 // pred_check_branch
        %232 = sbr.rel (%p230) target = $region32
      $region31: #{tpu_custom_call.1} parent=5 // pred_region
        // Predicated region
        $region33: #{tpu_custom_call.1} parent=31 // pred_check
          %p233 = pneg %p71
        $region34: #{tpu_custom_call.1} parent=31 // pred_check_branch
          %235 = sbr.rel (%p233) target = $region36
        $region35: #{tpu_custom_call.1} parent=31 // pred_region
          %s236 = smul.u32 2, %s24
          %p237 = scmp.lt.s32.totalorder %s23, 1
          %s238 = scalar_select %p237, %s23, 1
          %p239 = scmp.lt.s32.totalorder %s236, 1
          %s240 = scalar_select %p239, %s236, 1
          %s241 = smul.addr %s238, 2
          %s242 = sadd.s32 %s240, %s241
          %s243 = smul.addr %s242, 4
          %s244 = scalar_lea.vmem %s1, %s243
          %s245 = smul.u32 2, %s24
        $region36: #{tpu_custom_call.1} parent=31 // pred_fallthru
          _
        // Predicated region
        $region37: #{tpu_custom_call.1} parent=31 // pred_check
          %p246 = pneg %p97
        $region38: #{tpu_custom_call.1} parent=31 // pred_check_branch
          %248 = sbr.rel (%p246) target = $region40
        $region39: #{tpu_custom_call.1} parent=31 // pred_region
          %p249 = scmp.lt.s32.totalorder %s23, 1
          %s250 = scalar_select %p249, %s23, 1
          %s251 = smul.addr %s250, 4
          %s252 = smul.addr %s251, 8
          %s253 = scalar_lea.vmem %s2, %s252
        $region40: #{tpu_custom_call.1} parent=31 // pred_fallthru
          _
      $region32: #{tpu_custom_call.1} parent=5 // pred_fallthru
        _
      %p254 = scmp.le.s32.totalorder 1, %s16
      %p255 = scmp.lt.s32.totalorder %s16, 3
      %p256 = pnand %p254, %p255
      %p257 = pneg %p256
      // Predicated region
      $region41: #{tpu_custom_call.1} parent=5 // pred_check
        _
      $region42: #{tpu_custom_call.1} parent=5 // pred_check_branch
        %259 = sbr.rel (%p256) target = $region44
      $region43: #{tpu_custom_call.1} parent=5 // pred_region
        %s260 = ssub.s32 %s16, 1
        // Predicated region
        $region45: #{tpu_custom_call.1} parent=43 // pred_check
          %p261 = pneg %p49
        $region46: #{tpu_custom_call.1} parent=43 // pred_check_branch
          %263 = sbr.rel (%p261) target = $region48
        $region47: #{tpu_custom_call.1} parent=43 // pred_region
          %264 = dma.done [#allocation4], 16
        $region48: #{tpu_custom_call.1} parent=43 // pred_fallthru
          _
        %265 = sfence
        %p266 = pneg %p49
        %p267 = pneg %p46
        %s268 = smul.u32 2, %s26
        %p269 = scmp.lt.s32.totalorder %s25, 1
        %s270 = scalar_select %p269, %s25, 1
        %p271 = scmp.lt.s32.totalorder %s268, 1
        %s272 = scalar_select %p271, %s268, 1
        %s273 = smul.addr %s270, 2
        %s274 = sadd.s32 %s272, %s273
        %s275 = smul.addr %s274, 4
        %s276 = scalar_lea.vmem %s1, %s275
        %p277 = pneg %p77
        %p278 = pneg %p74
        %p279 = scmp.lt.s32.totalorder %s25, 1
        %s280 = scalar_select %p279, %s25, 1
        %s281 = smul.addr %s280, 4
        %s282 = smul.addr %s281, 8
        %s283 = scalar_lea.vmem %s2, %s282
        %p284 = pneg %p103
        %p285 = pneg %p100
        %p286 = pneg %p124
        %p287 = pneg %p121
        %p288 = pneg %p145
        %p289 = pneg %p142
        %p290 = pneg %p166
        %p291 = pneg %p163
        %p292 = pneg %p194
        %p293 = pneg %p191
        %s294 = sand.u32 %s181, 1
        %s295 = scalar_lea.sflag [#allocation3], %s294
        %s296 = sand.u32 %s181, 1
        %s297 = smul.addr %s296, 8
        %s298 = scalar_lea.vmem [#allocation5], %s297
        %s299 = smul.u32 2, %s26
        %p300 = scmp.lt.s32.totalorder %s25, 1
        %s301 = scalar_select %p300, %s25, 1
        %p302 = scmp.lt.s32.totalorder %s299, 1
        %s303 = scalar_select %p302, %s299, 1
        %s304 = smul.addr %s301, 2
        %s305 = sadd.s32 %s303, %s304
        %s306 = smul.addr %s305, 4
        %s307 = scalar_lea.vmem %s1, %s306
        %s308 = smul.u32 2, %s26
        %p309 = scmp.lt.s32.totalorder %s25, 1
        %s310 = scalar_select %p309, %s25, 1
        %s311 = smul.addr %s310, 4
        %s312 = smul.addr %s311, 8
        %s313 = scalar_lea.vmem %s2, %s312
        %s314 = smul.u32 2, %s26
        %s315 = sld [smem:[#allocation2 + %s25]]
        %v316 = vld [vmem:[%s3] sm:$0xff]
        %v317 = vld [vmem:[%s3 + $0x8] sm:$0xff]
        %v318 = vld [vmem:[%s3 + $0x10] sm:$0xff]
        %v319 = vld [vmem:[%s3 + $0x18] sm:$0xff]
        %v320 = vld [vmem:[%s4] sm:$0xf]
        %v321 = vld [vmem:[%s313] sm:$0xff]
        %v322 = vld [vmem:[%s313 + $0x8] sm:$0xff]
        %v323 = vld [vmem:[%s313 + $0x10] sm:$0xff]
        %v324 = vld [vmem:[%s313 + $0x18] sm:$0xff]
        %v325 = vld [vmem:[%s5] sm:$0xf]
        %v326 = vld [vmem:[%s307] sm:$0xff]
        %328 = vset.pattern.permute.xlu0 0
        %329 = vperm.xlu0 %328, %v321
        %v330 = vpop.permute.xlu0 %329
        %333 = vset.pattern.permute.xlu0 0
        %334 = vperm.xlu0 %333, %v322
        %v335 = vpop.permute.xlu0 %334
        %338 = vset.pattern.permute.xlu0 0
        %339 = vperm.xlu0 %338, %v323
        %v340 = vpop.permute.xlu0 %339
        %343 = vset.pattern.permute.xlu0 0
        %344 = vperm.xlu0 %343, %v324
        %v345 = vpop.permute.xlu0 %344
        %v348 = vcombine.high %v326, %v326
        %vm349 = vcmask 31744
        %v351 = vsel %vm349, %v316, 0
        %v354 = vsel %vm349, %v317, 0
        %v357 = vsel %vm349, %v318, 0
        %v360 = vsel %vm349, %v319, 0
        %vm362 = vcmask 1043456
        %v363 = vsel %vm362, %v326, 0
        %v365 = vsel %vm362, %v348, 0
        %v367 = vand.u32 %v365, 4294901760
        %368 = vmatprep.subr.mxu0 %v367
        %v369 = vand.u32 %v363, 4294901760
        %370 = vmatpush1.msra.mxu0 %v369
        %371 = vmatprep.subr.mxu0 0.0
        %372 = vmatpush1.msra.mxu0 0.0
        %373 = vmatprep.subr.mxu0 0.0
        %374 = vmatpush1.msra.mxu0 0.0
        %375 = vmatprep.subr.mxu0 0.0
        %376 = vmatpush1.msra.mxu0 0.0
        %377 = vmatprep.subr.mxu0 0.0
        %378 = vmatpush1.msra.mxu0 0.0
        %379 = vmatprep.subr.mxu0 0.0
        %380 = vmatpush1.msra.mxu0 0.0
        %381 = vmatprep.subr.mxu0 0.0
        %382 = vmatpush1.msra.mxu0 0.0
        %383 = vmatprep.subr.mxu0 0.0
        %384 = vmatpush1.msra.mxu0 0.0
        %385 = vmatprep.subr.mxu0 0.0
        %386 = vmatpush1.msra.mxu0 0.0
        %387 = vmatprep.subr.mxu0 0.0
        %388 = vmatpush1.msra.mxu0 0.0
        %389 = vmatprep.subr.mxu0 0.0
        %390 = vmatpush1.msra.mxu0 0.0
        %391 = vmatprep.subr.mxu0 0.0
        %392 = vmatpush1.msra.mxu0 0.0
        %393 = vmatprep.subr.mxu0 0.0
        %394 = vmatpush1.msra.mxu0 0.0
        %395 = vmatprep.subr.mxu0 0.0
        %396 = vmatpush1.msra.mxu0 0.0
        %397 = vmatprep.subr.mxu0 0.0
        %398 = vmatpush1.msra.mxu0 0.0
        %399 = vmatprep.subr.mxu0 0.0
        %400 = vmatpush1.msra.mxu0 0.0
        %401 = vmatprep.subr.mxu0 0.0
        %402 = vmatpush1.msra.mxu0 0.0
        %403 = vmatprep.subr.mxu0 0.0
        %404 = vmatpush1.msra.mxu0 0.0
        %405 = vmatprep.subr.mxu0 0.0
        %406 = vmatpush1.msra.mxu0 0.0
        %407 = vmatprep.subr.mxu0 0.0
        %408 = vmatpush1.msra.mxu0 0.0
        %409 = vmatprep.subr.mxu0 0.0
        %410 = vmatpush1.msra.mxu0 0.0
        %411 = vmatprep.subr.mxu0 0.0
        %412 = vmatpush1.msra.mxu0 0.0
        %413 = vmatprep.subr.mxu0 0.0
        %414 = vmatpush1.msra.mxu0 0.0
        %415 = vmatprep.subr.mxu0 0.0
        %416 = vmatpush1.msra.mxu0 0.0
        %417 = vmatprep.subr.mxu0 0.0
        %418 = vmatpush1.msra.mxu0 0.0
        %419 = vmatprep.subr.mxu0 0.0
        %420 = vmatpush1.msra.mxu0 0.0
        %421 = vmatprep.subr.mxu0 0.0
        %422 = vmatpush1.msra.mxu0 0.0
        %423 = vmatprep.subr.mxu0 0.0
        %424 = vmatpush1.msra.mxu0 0.0
        %425 = vmatprep.subr.mxu0 0.0
        %426 = vmatpush1.msra.mxu0 0.0
        %427 = vmatprep.subr.mxu0 0.0
        %428 = vmatpush1.msra.mxu0 0.0
        %429 = vmatprep.subr.mxu0 0.0
        %430 = vmatpush1.msra.mxu0 0.0
        %431 = vmatprep.subr.mxu0 0.0
        %432 = vmatpush1.msra.mxu0 0.0
        %433 = vmatprep.mubr.f32.mxu0 0.0
        %v434 = vand.u32 %v351, 4294901760
        %v435 = vsub.f32 %v351, %v434
        %v436 = vand.u32 %v435, 4294901760
        %v437 = vsub.f32 %v435, %v436
        %v438 = vand.u32 %v437, 4294901760
        %439 = vmatmul.mubr.f32.gmra.mrb[0].mxu0 %v438
        %v440 = vpop.f32.mrb[0].mxu0
        %v441 = vadd.f32 %v330, %v440
        %v442 = vpop.f32.mrb[0].mxu0
        %v443 = vadd.f32 %v330, %v442
        %444 = vmatprep.mubr.f32.mxu0 0.0
        %v445 = vand.u32 %v354, 4294901760
        %v446 = vsub.f32 %v354, %v445
        %v447 = vand.u32 %v446, 4294901760
        %v448 = vsub.f32 %v446, %v447
        %v449 = vand.u32 %v448, 4294901760
        %450 = vmatmul.mubr.f32.gmra.mrb[0].mxu0 %v449
        %v451 = vpop.f32.mrb[0].mxu0
        %v452 = vadd.f32 %v335, %v451
        %v453 = vpop.f32.mrb[0].mxu0
        %v454 = vadd.f32 %v335, %v453
        %455 = vmatprep.mubr.f32.mxu0 0.0
        %v456 = vand.u32 %v357, 4294901760
        %v457 = vsub.f32 %v357, %v456
        %v458 = vand.u32 %v457, 4294901760
        %v459 = vsub.f32 %v457, %v458
        %v460 = vand.u32 %v459, 4294901760
        %461 = vmatmul.mubr.f32.gmra.mrb[0].mxu0 %v460
        %v462 = vpop.f32.mrb[0].mxu0
        %v463 = vadd.f32 %v340, %v462
        %v464 = vpop.f32.mrb[0].mxu0
        %v465 = vadd.f32 %v340, %v464
        %466 = vmatprep.mubr.f32.mxu0 0.0
        %v467 = vand.u32 %v360, 4294901760
        %v468 = vsub.f32 %v360, %v467
        %v469 = vand.u32 %v468, 4294901760
        %v470 = vsub.f32 %v468, %v469
        %v471 = vand.u32 %v470, 4294901760
        %472 = vmatmul.mubr.f32.gmra.mrb[0].mxu0 %v471
        %v473 = vpop.f32.mrb[0].mxu0
        %v474 = vadd.f32 %v345, %v473
        %v475 = vpop.f32.mrb[0].mxu0
        %v476 = vadd.f32 %v345, %v475
        %477 = vdwg.mxu0
        %v478 = vand.u32 %v365, 4294901760
        %v479 = vsub.f32 %v365, %v478
        %v480 = vand.u32 %v479, 4294901760
        %v481 = vsub.f32 %v479, %v480
        %v482 = vand.u32 %v481, 4294901760
        %483 = vmatprep.subr.mxu0 %v482
        %v484 = vand.u32 %v363, 4294901760
        %v485 = vsub.f32 %v363, %v484
        %v486 = vand.u32 %v485, 4294901760
        %v487 = vsub.f32 %v485, %v486
        %v488 = vand.u32 %v487, 4294901760
        %489 = vmatpush1.msra.mxu0 %v488
        %490 = vmatprep.subr.mxu0 0.0
        %491 = vmatpush1.msra.mxu0 0.0
        %492 = vmatprep.subr.mxu0 0.0
        %493 = vmatpush1.msra.mxu0 0.0
        %494 = vmatprep.subr.mxu0 0.0
        %495 = vmatpush1.msra.mxu0 0.0
        %496 = vmatprep.subr.mxu0 0.0
        %497 = vmatpush1.msra.mxu0 0.0
        %498 = vmatprep.subr.mxu0 0.0
        %499 = vmatpush1.msra.mxu0 0.0
        %500 = vmatprep.subr.mxu0 0.0
        %501 = vmatpush1.msra.mxu0 0.0
        %502 = vmatprep.subr.mxu0 0.0
        %503 = vmatpush1.msra.mxu0 0.0
        %504 = vmatprep.subr.mxu0 0.0
        %505 = vmatpush1.msra.mxu0 0.0
        %506 = vmatprep.subr.mxu0 0.0
        %507 = vmatpush1.msra.mxu0 0.0
        %508 = vmatprep.subr.mxu0 0.0
        %509 = vmatpush1.msra.mxu0 0.0
        %510 = vmatprep.subr.mxu0 0.0
        %511 = vmatpush1.msra.mxu0 0.0
        %512 = vmatprep.subr.mxu0 0.0
        %513 = vmatpush1.msra.mxu0 0.0
        %514 = vmatprep.subr.mxu0 0.0
        %515 = vmatpush1.msra.mxu0 0.0
        %516 = vmatprep.subr.mxu0 0.0
        %517 = vmatpush1.msra.mxu0 0.0
        %518 = vmatprep.subr.mxu0 0.0
        %519 = vmatpush1.msra.mxu0 0.0
        %520 = vmatprep.subr.mxu0 0.0
        %521 = vmatpush1.msra.mxu0 0.0
        %522 = vmatprep.subr.mxu0 0.0
        %523 = vmatpush1.msra.mxu0 0.0
        %524 = vmatprep.subr.mxu0 0.0
        %525 = vmatpush1.msra.mxu0 0.0
        %526 = vmatprep.subr.mxu0 0.0
        %527 = vmatpush1.msra.mxu0 0.0
        %528 = vmatprep.subr.mxu0 0.0
        %529 = vmatpush1.msra.mxu0 0.0
        %530 = vmatprep.subr.mxu0 0.0
        %531 = vmatpush1.msra.mxu0 0.0
        %532 = vmatprep.subr.mxu0 0.0
        %533 = vmatpush1.msra.mxu0 0.0
        %534 = vmatprep.subr.mxu0 0.0
        %535 = vmatpush1.msra.mxu0 0.0
        %536 = vmatprep.subr.mxu0 0.0
        %537 = vmatpush1.msra.mxu0 0.0
        %538 = vmatprep.subr.mxu0 0.0
        %539 = vmatpush1.msra.mxu0 0.0
        %540 = vmatprep.subr.mxu0 0.0
        %541 = vmatpush1.msra.mxu0 0.0
        %542 = vmatprep.subr.mxu0 0.0
        %543 = vmatpush1.msra.mxu0 0.0
        %544 = vmatprep.subr.mxu0 0.0
        %545 = vmatpush1.msra.mxu0 0.0
        %546 = vmatprep.subr.mxu0 0.0
        %547 = vmatpush1.msra.mxu0 0.0
        %548 = vmatprep.subr.mxu0 0.0
        %549 = vmatpush1.msra.mxu0 0.0
        %550 = vmatprep.subr.mxu0 0.0
        %551 = vmatpush1.msra.mxu0 0.0
        %552 = vmatprep.mubr.f32.mxu0 0.0
        %v553 = vand.u32 %v351, 4294901760
        %554 = vmatmul.mubr.f32.gmra.mrb[0].mxu0 %v553
        %v555 = vpop.f32.mrb[0].mxu0
        %v556 = vadd.f32 %v441, %v555
        %v557 = vpop.f32.mrb[0].mxu0
        %v558 = vadd.f32 %v443, %v557
        %559 = vmatprep.mubr.f32.mxu0 0.0
        %v560 = vand.u32 %v354, 4294901760
        %561 = vmatmul.mubr.f32.gmra.mrb[0].mxu0 %v560
        %v562 = vpop.f32.mrb[0].mxu0
        %v563 = vadd.f32 %v452, %v562
        %v564 = vpop.f32.mrb[0].mxu0
        %v565 = vadd.f32 %v454, %v564
        %566 = vmatprep.mubr.f32.mxu0 0.0
        %v567 = vand.u32 %v357, 4294901760
        %568 = vmatmul.mubr.f32.gmra.mrb[0].mxu0 %v567
        %v569 = vpop.f32.mrb[0].mxu0
        %v570 = vadd.f32 %v463, %v569
        %v571 = vpop.f32.mrb[0].mxu0
        %v572 = vadd.f32 %v465, %v571
        %573 = vmatprep.mubr.f32.mxu0 0.0
        %v574 = vand.u32 %v360, 4294901760
        %575 = vmatmul.mubr.f32.gmra.mrb[0].mxu0 %v574
        %v576 = vpop.f32.mrb[0].mxu0
        %v577 = vadd.f32 %v474, %v576
        %v578 = vpop.f32.mrb[0].mxu0
        %v579 = vadd.f32 %v476, %v578
        %580 = vdwg.mxu0
        %v581 = vand.u32 %v365, 4294901760
        %v582 = vsub.f32 %v365, %v581
        %583 = vmatprep.subr.mxu0 %v582
        %v584 = vand.u32 %v363, 4294901760
        %v585 = vsub.f32 %v363, %v584
        %586 = vmatpush1.msra.mxu0 %v585
        %587 = vmatprep.subr.mxu0 0.0
        %588 = vmatpush1.msra.mxu0 0.0
        %589 = vmatprep.subr.mxu0 0.0
        %590 = vmatpush1.msra.mxu0 0.0
        %591 = vmatprep.subr.mxu0 0.0
        %592 = vmatpush1.msra.mxu0 0.0
        %593 = vmatprep.subr.mxu0 0.0
        %594 = vmatpush1.msra.mxu0 0.0
        %595 = vmatprep.subr.mxu0 0.0
        %596 = vmatpush1.msra.mxu0 0.0
        %597 = vmatprep.subr.mxu0 0.0
        %598 = vmatpush1.msra.mxu0 0.0
        %599 = vmatprep.subr.mxu0 0.0
        %600 = vmatpush1.msra.mxu0 0.0
        %601 = vmatprep.subr.mxu0 0.0
        %602 = vmatpush1.msra.mxu0 0.0
        %603 = vmatprep.subr.mxu0 0.0
        %604 = vmatpush1.msra.mxu0 0.0
        %605 = vmatprep.subr.mxu0 0.0
        %606 = vmatpush1.msra.mxu0 0.0
        %607 = vmatprep.subr.mxu0 0.0
        %608 = vmatpush1.msra.mxu0 0.0
        %609 = vmatprep.subr.mxu0 0.0
        %610 = vmatpush1.msra.mxu0 0.0
        %611 = vmatprep.subr.mxu0 0.0
        %612 = vmatpush1.msra.mxu0 0.0
        %613 = vmatprep.subr.mxu0 0.0
        %614 = vmatpush1.msra.mxu0 0.0
        %615 = vmatprep.subr.mxu0 0.0
        %616 = vmatpush1.msra.mxu0 0.0
        %617 = vmatprep.subr.mxu0 0.0
        %618 = vmatpush1.msra.mxu0 0.0
        %619 = vmatprep.subr.mxu0 0.0
        %620 = vmatpush1.msra.mxu0 0.0
        %621 = vmatprep.subr.mxu0 0.0
        %622 = vmatpush1.msra.mxu0 0.0
        %623 = vmatprep.subr.mxu0 0.0
        %624 = vmatpush1.msra.mxu0 0.0
        %625 = vmatprep.subr.mxu0 0.0
        %626 = vmatpush1.msra.mxu0 0.0
        %627 = vmatprep.subr.mxu0 0.0
        %628 = vmatpush1.msra.mxu0 0.0
        %629 = vmatprep.subr.mxu0 0.0
        %630 = vmatpush1.msra.mxu0 0.0
        %631 = vmatprep.subr.mxu0 0.0
        %632 = vmatpush1.msra.mxu0 0.0
        %633 = vmatprep.subr.mxu0 0.0
        %634 = vmatpush1.msra.mxu0 0.0
        %635 = vmatprep.subr.mxu0 0.0
        %636 = vmatpush1.msra.mxu0 0.0
        %637 = vmatprep.subr.mxu0 0.0
        %638 = vmatpush1.msra.mxu0 0.0
        %639 = vmatprep.subr.mxu0 0.0
        %640 = vmatpush1.msra.mxu0 0.0
        %641 = vmatprep.subr.mxu0 0.0
        %642 = vmatpush1.msra.mxu0 0.0
        %643 = vmatprep.subr.mxu0 0.0
        %644 = vmatpush1.msra.mxu0 0.0
        %645 = vmatprep.subr.mxu0 0.0
        %646 = vmatpush1.msra.mxu0 0.0
        %647 = vmatprep.subr.mxu0 0.0
        %648 = vmatpush1.msra.mxu0 0.0
        %649 = vmatprep.mubr.f32.mxu0 0.0
        %v650 = vand.u32 %v351, 4294901760
        %v651 = vsub.f32 %v351, %v650
        %652 = vmatmul.mubr.f32.gmra.mrb[0].mxu0 %v651
        %v653 = vpop.f32.mrb[0].mxu0
        %v654 = vadd.f32 %v556, %v653
        %v655 = vpop.f32.mrb[0].mxu0
        %v656 = vadd.f32 %v558, %v655
        %657 = vmatprep.mubr.f32.mxu0 0.0
        %v658 = vand.u32 %v354, 4294901760
        %v659 = vsub.f32 %v354, %v658
        %660 = vmatmul.mubr.f32.gmra.mrb[0].mxu0 %v659
        %v661 = vpop.f32.mrb[0].mxu0
        %v662 = vadd.f32 %v563, %v661
        %v663 = vpop.f32.mrb[0].mxu0
        %v664 = vadd.f32 %v565, %v663
        %665 = vmatprep.mubr.f32.mxu0 0.0
        %v666 = vand.u32 %v357, 4294901760
        %v667 = vsub.f32 %v357, %v666
        %668 = vmatmul.mubr.f32.gmra.mrb[0].mxu0 %v667
        %v669 = vpop.f32.mrb[0].mxu0
        %v670 = vadd.f32 %v570, %v669
        %v671 = vpop.f32.mrb[0].mxu0
        %v672 = vadd.f32 %v572, %v671
        %673 = vmatprep.mubr.f32.mxu0 0.0
        %v674 = vand.u32 %v360, 4294901760
        %v675 = vsub.f32 %v360, %v674
        %676 = vmatmul.mubr.f32.gmra.mrb[0].mxu0 %v675
        %v677 = vpop.f32.mrb[0].mxu0
        %v678 = vadd.f32 %v577, %v677
        %v679 = vpop.f32.mrb[0].mxu0
        %v680 = vadd.f32 %v579, %v679
        %681 = vdwg.mxu0
        %v682 = vand.u32 %v365, 4294901760
        %683 = vmatprep.subr.mxu0 %v682
        %v684 = vand.u32 %v363, 4294901760
        %685 = vmatpush1.msra.mxu0 %v684
        %686 = vmatprep.subr.mxu0 0.0
        %687 = vmatpush1.msra.mxu0 0.0
        %688 = vmatprep.subr.mxu0 0.0
        %689 = vmatpush1.msra.mxu0 0.0
        %690 = vmatprep.subr.mxu0 0.0
        %691 = vmatpush1.msra.mxu0 0.0
        %692 = vmatprep.subr.mxu0 0.0
        %693 = vmatpush1.msra.mxu0 0.0
        %694 = vmatprep.subr.mxu0 0.0
        %695 = vmatpush1.msra.mxu0 0.0
        %696 = vmatprep.subr.mxu0 0.0
        %697 = vmatpush1.msra.mxu0 0.0
        %698 = vmatprep.subr.mxu0 0.0
        %699 = vmatpush1.msra.mxu0 0.0
        %700 = vmatprep.subr.mxu0 0.0
        %701 = vmatpush1.msra.mxu0 0.0
        %702 = vmatprep.subr.mxu0 0.0
        %703 = vmatpush1.msra.mxu0 0.0
        %704 = vmatprep.subr.mxu0 0.0
        %705 = vmatpush1.msra.mxu0 0.0
        %706 = vmatprep.subr.mxu0 0.0
        %707 = vmatpush1.msra.mxu0 0.0
        %708 = vmatprep.subr.mxu0 0.0
        %709 = vmatpush1.msra.mxu0 0.0
        %710 = vmatprep.subr.mxu0 0.0
        %711 = vmatpush1.msra.mxu0 0.0
        %712 = vmatprep.subr.mxu0 0.0
        %713 = vmatpush1.msra.mxu0 0.0
        %714 = vmatprep.subr.mxu0 0.0
        %715 = vmatpush1.msra.mxu0 0.0
        %716 = vmatprep.subr.mxu0 0.0
        %717 = vmatpush1.msra.mxu0 0.0
        %718 = vmatprep.subr.mxu0 0.0
        %719 = vmatpush1.msra.mxu0 0.0
        %720 = vmatprep.subr.mxu0 0.0
        %721 = vmatpush1.msra.mxu0 0.0
        %722 = vmatprep.subr.mxu0 0.0
        %723 = vmatpush1.msra.mxu0 0.0
        %724 = vmatprep.subr.mxu0 0.0
        %725 = vmatpush1.msra.mxu0 0.0
        %726 = vmatprep.subr.mxu0 0.0
        %727 = vmatpush1.msra.mxu0 0.0
        %728 = vmatprep.subr.mxu0 0.0
        %729 = vmatpush1.msra.mxu0 0.0
        %730 = vmatprep.subr.mxu0 0.0
        %731 = vmatpush1.msra.mxu0 0.0
        %732 = vmatprep.subr.mxu0 0.0
        %733 = vmatpush1.msra.mxu0 0.0
        %734 = vmatprep.subr.mxu0 0.0
        %735 = vmatpush1.msra.mxu0 0.0
        %736 = vmatprep.subr.mxu0 0.0
        %737 = vmatpush1.msra.mxu0 0.0
        %738 = vmatprep.subr.mxu0 0.0
        %739 = vmatpush1.msra.mxu0 0.0
        %740 = vmatprep.subr.mxu0 0.0
        %741 = vmatpush1.msra.mxu0 0.0
        %742 = vmatprep.subr.mxu0 0.0
        %743 = vmatpush1.msra.mxu0 0.0
        %744 = vmatprep.subr.mxu0 0.0
        %745 = vmatpush1.msra.mxu0 0.0
        %746 = vmatprep.subr.mxu0 0.0
        %747 = vmatpush1.msra.mxu0 0.0
        %748 = vmatprep.mubr.f32.mxu0 0.0
        %v749 = vand.u32 %v351, 4294901760
        %v750 = vsub.f32 %v351, %v749
        %v751 = vand.u32 %v750, 4294901760
        %752 = vmatmul.mubr.f32.gmra.mrb[0].mxu0 %v751
        %v753 = vpop.f32.mrb[0].mxu0
        %v754 = vadd.f32 %v654, %v753
        %v755 = vpop.f32.mrb[0].mxu0
        %v756 = vadd.f32 %v656, %v755
        %757 = vmatprep.mubr.f32.mxu0 0.0
        %v758 = vand.u32 %v354, 4294901760
        %v759 = vsub.f32 %v354, %v758
        %v760 = vand.u32 %v759, 4294901760
        %761 = vmatmul.mubr.f32.gmra.mrb[0].mxu0 %v760
        %v762 = vpop.f32.mrb[0].mxu0
        %v763 = vadd.f32 %v662, %v762
        %v764 = vpop.f32.mrb[0].mxu0
        %v765 = vadd.f32 %v664, %v764
        %766 = vmatprep.mubr.f32.mxu0 0.0
        %v767 = vand.u32 %v357, 4294901760
        %v768 = vsub.f32 %v357, %v767
        %v769 = vand.u32 %v768, 4294901760
        %770 = vmatmul.mubr.f32.gmra.mrb[0].mxu0 %v769
        %v771 = vpop.f32.mrb[0].mxu0
        %v772 = vadd.f32 %v670, %v771
        %v773 = vpop.f32.mrb[0].mxu0
        %v774 = vadd.f32 %v672, %v773
        %775 = vmatprep.mubr.f32.mxu0 0.0
        %v776 = vand.u32 %v360, 4294901760
        %v777 = vsub.f32 %v360, %v776
        %v778 = vand.u32 %v777, 4294901760
        %779 = vmatmul.mubr.f32.gmra.mrb[0].mxu0 %v778
        %v780 = vpop.f32.mrb[0].mxu0
        %v781 = vadd.f32 %v678, %v780
        %v782 = vpop.f32.mrb[0].mxu0
        %v783 = vadd.f32 %v680, %v782
        %784 = vdwg.mxu0
        %v785 = vand.u32 %v365, 4294901760
        %v786 = vsub.f32 %v365, %v785
        %v787 = vand.u32 %v786, 4294901760
        %788 = vmatprep.subr.mxu0 %v787
        %v789 = vand.u32 %v363, 4294901760
        %v790 = vsub.f32 %v363, %v789
        %v791 = vand.u32 %v790, 4294901760
        %792 = vmatpush1.msra.mxu0 %v791
        %793 = vmatprep.subr.mxu0 0.0
        %794 = vmatpush1.msra.mxu0 0.0
        %795 = vmatprep.subr.mxu0 0.0
        %796 = vmatpush1.msra.mxu0 0.0
        %797 = vmatprep.subr.mxu0 0.0
        %798 = vmatpush1.msra.mxu0 0.0
        %799 = vmatprep.subr.mxu0 0.0
        %800 = vmatpush1.msra.mxu0 0.0
        %801 = vmatprep.subr.mxu0 0.0
        %802 = vmatpush1.msra.mxu0 0.0
        %803 = vmatprep.subr.mxu0 0.0
        %804 = vmatpush1.msra.mxu0 0.0
        %805 = vmatprep.subr.mxu0 0.0
        %806 = vmatpush1.msra.mxu0 0.0
        %807 = vmatprep.subr.mxu0 0.0
        %808 = vmatpush1.msra.mxu0 0.0
        %809 = vmatprep.subr.mxu0 0.0
        %810 = vmatpush1.msra.mxu0 0.0
        %811 = vmatprep.subr.mxu0 0.0
        %812 = vmatpush1.msra.mxu0 0.0
        %813 = vmatprep.subr.mxu0 0.0
        %814 = vmatpush1.msra.mxu0 0.0
        %815 = vmatprep.subr.mxu0 0.0
        %816 = vmatpush1.msra.mxu0 0.0
        %817 = vmatprep.subr.mxu0 0.0
        %818 = vmatpush1.msra.mxu0 0.0
        %819 = vmatprep.subr.mxu0 0.0
        %820 = vmatpush1.msra.mxu0 0.0
        %821 = vmatprep.subr.mxu0 0.0
        %822 = vmatpush1.msra.mxu0 0.0
        %823 = vmatprep.subr.mxu0 0.0
        %824 = vmatpush1.msra.mxu0 0.0
        %825 = vmatprep.subr.mxu0 0.0
        %826 = vmatpush1.msra.mxu0 0.0
        %827 = vmatprep.subr.mxu0 0.0
        %828 = vmatpush1.msra.mxu0 0.0
        %829 = vmatprep.subr.mxu0 0.0
        %830 = vmatpush1.msra.mxu0 0.0
        %831 = vmatprep.subr.mxu0 0.0
        %832 = vmatpush1.msra.mxu0 0.0
        %833 = vmatprep.subr.mxu0 0.0
        %834 = vmatpush1.msra.mxu0 0.0
        %835 = vmatprep.subr.mxu0 0.0
        %836 = vmatpush1.msra.mxu0 0.0
        %837 = vmatprep.subr.mxu0 0.0
        %838 = vmatpush1.msra.mxu0 0.0
        %839 = vmatprep.subr.mxu0 0.0
        %840 = vmatpush1.msra.mxu0 0.0
        %841 = vmatprep.subr.mxu0 0.0
        %842 = vmatpush1.msra.mxu0 0.0
        %843 = vmatprep.subr.mxu0 0.0
        %844 = vmatpush1.msra.mxu0 0.0
        %845 = vmatprep.subr.mxu0 0.0
        %846 = vmatpush1.msra.mxu0 0.0
        %847 = vmatprep.subr.mxu0 0.0
        %848 = vmatpush1.msra.mxu0 0.0
        %849 = vmatprep.subr.mxu0 0.0
        %850 = vmatpush1.msra.mxu0 0.0
        %851 = vmatprep.subr.mxu0 0.0
        %852 = vmatpush1.msra.mxu0 0.0
        %853 = vmatprep.subr.mxu0 0.0
        %854 = vmatpush1.msra.mxu0 0.0
        %855 = vmatprep.mubr.f32.mxu0 0.0
        %v856 = vand.u32 %v351, 4294901760
        %857 = vmatmul.mubr.f32.gmra.mrb[0].mxu0 %v856
        %v858 = vpop.f32.mrb[0].mxu0
        %v859 = vadd.f32 %v754, %v858
        %v860 = vpop.f32.mrb[0].mxu0
        %v861 = vadd.f32 %v756, %v860
        %862 = vmatprep.mubr.f32.mxu0 0.0
        %v863 = vand.u32 %v354, 4294901760
        %864 = vmatmul.mubr.f32.gmra.mrb[0].mxu0 %v863
        %v865 = vpop.f32.mrb[0].mxu0
        %v866 = vadd.f32 %v763, %v865
        %v867 = vpop.f32.mrb[0].mxu0
        %v868 = vadd.f32 %v765, %v867
        %869 = vmatprep.mubr.f32.mxu0 0.0
        %v870 = vand.u32 %v357, 4294901760
        %871 = vmatmul.mubr.f32.gmra.mrb[0].mxu0 %v870
        %v872 = vpop.f32.mrb[0].mxu0
        %v873 = vadd.f32 %v772, %v872
        %v874 = vpop.f32.mrb[0].mxu0
        %v875 = vadd.f32 %v774, %v874
        %876 = vmatprep.mubr.f32.mxu0 0.0
        %v877 = vand.u32 %v360, 4294901760
        %878 = vmatmul.mubr.f32.gmra.mrb[0].mxu0 %v877
        %v879 = vpop.f32.mrb[0].mxu0
        %v880 = vadd.f32 %v781, %v879
        %v881 = vpop.f32.mrb[0].mxu0
        %v882 = vadd.f32 %v783, %v881
        %883 = vdwg.mxu0
        %v884 = vand.u32 %v365, 4294901760
        %885 = vmatprep.subr.mxu0 %v884
        %v886 = vand.u32 %v363, 4294901760
        %887 = vmatpush1.msra.mxu0 %v886
        %888 = vmatprep.subr.mxu0 0.0
        %889 = vmatpush1.msra.mxu0 0.0
        %890 = vmatprep.subr.mxu0 0.0
        %891 = vmatpush1.msra.mxu0 0.0
        %892 = vmatprep.subr.mxu0 0.0
        %893 = vmatpush1.msra.mxu0 0.0
        %894 = vmatprep.subr.mxu0 0.0
        %895 = vmatpush1.msra.mxu0 0.0
        %896 = vmatprep.subr.mxu0 0.0
        %897 = vmatpush1.msra.mxu0 0.0
        %898 = vmatprep.subr.mxu0 0.0
        %899 = vmatpush1.msra.mxu0 0.0
        %900 = vmatprep.subr.mxu0 0.0
        %901 = vmatpush1.msra.mxu0 0.0
        %902 = vmatprep.subr.mxu0 0.0
        %903 = vmatpush1.msra.mxu0 0.0
        %904 = vmatprep.subr.mxu0 0.0
        %905 = vmatpush1.msra.mxu0 0.0
        %906 = vmatprep.subr.mxu0 0.0
        %907 = vmatpush1.msra.mxu0 0.0
        %908 = vmatprep.subr.mxu0 0.0
        %909 = vmatpush1.msra.mxu0 0.0
        %910 = vmatprep.subr.mxu0 0.0
        %911 = vmatpush1.msra.mxu0 0.0
        %912 = vmatprep.subr.mxu0 0.0
        %913 = vmatpush1.msra.mxu0 0.0
        %914 = vmatprep.subr.mxu0 0.0
        %915 = vmatpush1.msra.mxu0 0.0
        %916 = vmatprep.subr.mxu0 0.0
        %917 = vmatpush1.msra.mxu0 0.0
        %918 = vmatprep.subr.mxu0 0.0
        %919 = vmatpush1.msra.mxu0 0.0
        %920 = vmatprep.subr.mxu0 0.0
        %921 = vmatpush1.msra.mxu0 0.0
        %922 = vmatprep.subr.mxu0 0.0
        %923 = vmatpush1.msra.mxu0 0.0
        %924 = vmatprep.subr.mxu0 0.0
        %925 = vmatpush1.msra.mxu0 0.0
        %926 = vmatprep.subr.mxu0 0.0
        %927 = vmatpush1.msra.mxu0 0.0
        %928 = vmatprep.subr.mxu0 0.0
        %929 = vmatpush1.msra.mxu0 0.0
        %930 = vmatprep.subr.mxu0 0.0
        %931 = vmatpush1.msra.mxu0 0.0
        %932 = vmatprep.subr.mxu0 0.0
        %933 = vmatpush1.msra.mxu0 0.0
        %934 = vmatprep.subr.mxu0 0.0
        %935 = vmatpush1.msra.mxu0 0.0
        %936 = vmatprep.subr.mxu0 0.0
        %937 = vmatpush1.msra.mxu0 0.0
        %938 = vmatprep.subr.mxu0 0.0
        %939 = vmatpush1.msra.mxu0 0.0
        %940 = vmatprep.subr.mxu0 0.0
        %941 = vmatpush1.msra.mxu0 0.0
        %942 = vmatprep.subr.mxu0 0.0
        %943 = vmatpush1.msra.mxu0 0.0
        %944 = vmatprep.subr.mxu0 0.0
        %945 = vmatpush1.msra.mxu0 0.0
        %946 = vmatprep.subr.mxu0 0.0
        %947 = vmatpush1.msra.mxu0 0.0
        %948 = vmatprep.subr.mxu0 0.0
        %949 = vmatpush1.msra.mxu0 0.0
        %950 = vmatprep.mubr.f32.mxu0 0.0
        %v951 = vand.u32 %v351, 4294901760
        %952 = vmatmul.mubr.f32.gmra.mrb[0].mxu0 %v951
        %v953 = vpop.f32.mrb[0].mxu0
        %v954 = vadd.f32 %v859, %v953
        %v955 = vpop.f32.mrb[0].mxu0
        %v956 = vadd.f32 %v861, %v955
        %957 = vmatprep.mubr.f32.mxu0 0.0
        %v958 = vand.u32 %v354, 4294901760
        %959 = vmatmul.mubr.f32.gmra.mrb[0].mxu0 %v958
        %v960 = vpop.f32.mrb[0].mxu0
        %v961 = vadd.f32 %v866, %v960
        %v962 = vpop.f32.mrb[0].mxu0
        %v963 = vadd.f32 %v868, %v962
        %964 = vmatprep.mubr.f32.mxu0 0.0
        %v965 = vand.u32 %v357, 4294901760
        %966 = vmatmul.mubr.f32.gmra.mrb[0].mxu0 %v965
        %v967 = vpop.f32.mrb[0].mxu0
        %v968 = vadd.f32 %v873, %v967
        %v969 = vpop.f32.mrb[0].mxu0
        %v970 = vadd.f32 %v875, %v969
        %971 = vmatprep.mubr.f32.mxu0 0.0
        %v972 = vand.u32 %v360, 4294901760
        %973 = vmatmul.mubr.f32.gmra.mrb[0].mxu0 %v972
        %v974 = vpop.f32.mrb[0].mxu0
        %v975 = vadd.f32 %v880, %v974
        %v976 = vpop.f32.mrb[0].mxu0
        %v977 = vadd.f32 %v882, %v976
        %978 = vdwg.mxu0
        %v979 = vxor.u32 %v954, 2147483648
        %v980 = vxor.u32 %v956, 2147483648
        %v981 = vxor.u32 %v961, 2147483648
        %v982 = vxor.u32 %v963, 2147483648
        %v983 = vxor.u32 %v968, 2147483648
        %v984 = vxor.u32 %v970, 2147483648
        %v985 = vxor.u32 %v975, 2147483648
        %v986 = vxor.u32 %v977, 2147483648
        %v987 = vmul.f32 %v979, 1.442695
        %v988 = vpow.pop %v987
        %v989 = vmul.f32 %v980, 1.442695
        %v990 = vpow.pop %v989
        %v991 = vmul.f32 %v981, 1.442695
        %v992 = vpow.pop %v991
        %v993 = vmul.f32 %v982, 1.442695
        %v994 = vpow.pop %v993
        %v995 = vmul.f32 %v983, 1.442695
        %v996 = vpow.pop %v995
        %v997 = vmul.f32 %v984, 1.442695
        %v998 = vpow.pop %v997
        %v999 = vmul.f32 %v985, 1.442695
        %v1000 = vpow.pop %v999
        %v1001 = vmul.f32 %v986, 1.442695
        %v1002 = vpow.pop %v1001
        %v1003 = vadd.f32 %v988, 1.0
        %v1004 = vadd.f32 %v990, 1.0
        %v1005 = vadd.f32 %v992, 1.0
        %v1006 = vadd.f32 %v994, 1.0
        %v1007 = vadd.f32 %v996, 1.0
        %v1008 = vadd.f32 %v998, 1.0
        %v1009 = vadd.f32 %v1000, 1.0
        %v1010 = vadd.f32 %v1002, 1.0
        %v1011 = vrcp.pop %v1003
        %v1012 = vmul.f32 1.0, %v1011
        %v1013 = vrcp.pop %v1004
        %v1014 = vmul.f32 1.0, %v1013
        %v1015 = vrcp.pop %v1005
        %v1016 = vmul.f32 1.0, %v1015
        %v1017 = vrcp.pop %v1006
        %v1018 = vmul.f32 1.0, %v1017
        %v1019 = vrcp.pop %v1007
        %v1020 = vmul.f32 1.0, %v1019
        %v1021 = vrcp.pop %v1008
        %v1022 = vmul.f32 1.0, %v1021
        %v1023 = vrcp.pop %v1009
        %v1024 = vmul.f32 1.0, %v1023
        %v1025 = vrcp.pop %v1010
        %v1026 = vmul.f32 1.0, %v1025
        %v1027 = vmul.f32 %v954, %v1012
        %v1028 = vmul.f32 %v956, %v1014
        %v1029 = vmul.f32 %v961, %v1016
        %v1030 = vmul.f32 %v963, %v1018
        %v1031 = vmul.f32 %v968, %v1020
        %v1032 = vmul.f32 %v970, %v1022
        %v1033 = vmul.f32 %v975, %v1024
        %v1034 = vmul.f32 %v977, %v1026
        %1036 = vset.pattern.permute.xlu0 0
        %1037 = vperm.xlu0 %1036, %v325
        %v1038 = vpop.permute.xlu0 %1037
        %vm1040 = vcmask 261120
        %v1042 = vsel %vm1040, %v320, 0
        %v1044 = vand.u32 %v1028, 4294901760
        %1045 = vmatprep.subr.mxu0 %v1044
        %v1046 = vand.u32 %v1027, 4294901760
        %1047 = vmatpush1.msra.mxu0 %v1046
        %v1048 = vand.u32 %v1030, 4294901760
        %1049 = vmatprep.subr.mxu0 %v1048
        %v1050 = vand.u32 %v1029, 4294901760
        %1051 = vmatpush1.msra.mxu0 %v1050
        %v1052 = vand.u32 %v1032, 4294901760
        %1053 = vmatprep.subr.mxu0 %v1052
        %v1054 = vand.u32 %v1031, 4294901760
        %1055 = vmatpush1.msra.mxu0 %v1054
        %v1056 = vand.u32 %v1034, 4294901760
        %1057 = vmatprep.subr.mxu0 %v1056
        %v1058 = vand.u32 %v1033, 4294901760
        %1059 = vmatpush1.msra.mxu0 %v1058
        %1060 = vmatprep.subr.mxu0 0.0
        %1061 = vmatpush1.msra.mxu0 0.0
        %1062 = vmatprep.subr.mxu0 0.0
        %1063 = vmatpush1.msra.mxu0 0.0
        %1064 = vmatprep.subr.mxu0 0.0
        %1065 = vmatpush1.msra.mxu0 0.0
        %1066 = vmatprep.subr.mxu0 0.0
        %1067 = vmatpush1.msra.mxu0 0.0
        %1068 = vmatprep.subr.mxu0 0.0
        %1069 = vmatpush1.msra.mxu0 0.0
        %1070 = vmatprep.subr.mxu0 0.0
        %1071 = vmatpush1.msra.mxu0 0.0
        %1072 = vmatprep.subr.mxu0 0.0
        %1073 = vmatpush1.msra.mxu0 0.0
        %1074 = vmatprep.subr.mxu0 0.0
        %1075 = vmatpush1.msra.mxu0 0.0
        %1076 = vmatprep.subr.mxu0 0.0
        %1077 = vmatpush1.msra.mxu0 0.0
        %1078 = vmatprep.subr.mxu0 0.0
        %1079 = vmatpush1.msra.mxu0 0.0
        %1080 = vmatprep.subr.mxu0 0.0
        %1081 = vmatpush1.msra.mxu0 0.0
        %1082 = vmatprep.subr.mxu0 0.0
        %1083 = vmatpush1.msra.mxu0 0.0
        %1084 = vmatprep.subr.mxu0 0.0
        %1085 = vmatpush1.msra.mxu0 0.0
        %1086 = vmatprep.subr.mxu0 0.0
        %1087 = vmatpush1.msra.mxu0 0.0
        %1088 = vmatprep.subr.mxu0 0.0
        %1089 = vmatpush1.msra.mxu0 0.0
        %1090 = vmatprep.subr.mxu0 0.0
        %1091 = vmatpush1.msra.mxu0 0.0
        %1092 = vmatprep.subr.mxu0 0.0
        %1093 = vmatpush1.msra.mxu0 0.0
        %1094 = vmatprep.subr.mxu0 0.0
        %1095 = vmatpush1.msra.mxu0 0.0
        %1096 = vmatprep.subr.mxu0 0.0
        %1097 = vmatpush1.msra.mxu0 0.0
        %1098 = vmatprep.subr.mxu0 0.0
        %1099 = vmatpush1.msra.mxu0 0.0
        %1100 = vmatprep.subr.mxu0 0.0
        %1101 = vmatpush1.msra.mxu0 0.0
        %1102 = vmatprep.subr.mxu0 0.0
        %1103 = vmatpush1.msra.mxu0 0.0
        %1104 = vmatprep.subr.mxu0 0.0
        %1105 = vmatpush1.msra.mxu0 0.0
        %1106 = vmatprep.subr.mxu0 0.0
        %1107 = vmatpush1.msra.mxu0 0.0
        %1108 = vmatprep.subr.mxu0 0.0
        %1109 = vmatpush1.msra.mxu0 0.0
        %1110 = vmatprep.subr.mxu0 0.0
        %1111 = vmatpush1.msra.mxu0 0.0
        %1112 = vmatprep.subr.mxu0 0.0
        %1113 = vmatpush1.msra.mxu0 0.0
        %1114 = vmatprep.subr.mxu0 0.0
        %1115 = vmatpush1.msra.mxu0 0.0
        %1116 = vmatprep.mubr.f32.mxu0 0.0
        %v1117 = vand.u32 %v1042, 4294901760
        %v1118 = vsub.f32 %v1042, %v1117
        %v1119 = vand.u32 %v1118, 4294901760
        %v1120 = vsub.f32 %v1118, %v1119
        %v1121 = vand.u32 %v1120, 4294901760
        %1122 = vmatmul.mubr.f32.gmra.mrb[0].mxu0 %v1121
        %v1123 = vpop.f32.mrb[0].mxu0
        %v1124 = vadd.f32 %v1038, %v1123
        %v1125 = vpop.f32.mrb[0].mxu0
        %v1126 = vadd.f32 %v1038, %v1125
        %1127 = vdwg.mxu0
        %v1128 = vand.u32 %v1028, 4294901760
        %v1129 = vsub.f32 %v1028, %v1128
        %v1130 = vand.u32 %v1129, 4294901760
        %v1131 = vsub.f32 %v1129, %v1130
        %v1132 = vand.u32 %v1131, 4294901760
        %1133 = vmatprep.subr.mxu0 %v1132
        %v1134 = vand.u32 %v1027, 4294901760
        %v1135 = vsub.f32 %v1027, %v1134
        %v1136 = vand.u32 %v1135, 4294901760
        %v1137 = vsub.f32 %v1135, %v1136
        %v1138 = vand.u32 %v1137, 4294901760
        %1139 = vmatpush1.msra.mxu0 %v1138
        %v1140 = vand.u32 %v1030, 4294901760
        %v1141 = vsub.f32 %v1030, %v1140
        %v1142 = vand.u32 %v1141, 4294901760
        %v1143 = vsub.f32 %v1141, %v1142
        %v1144 = vand.u32 %v1143, 4294901760
        %1145 = vmatprep.subr.mxu0 %v1144
        %v1146 = vand.u32 %v1029, 4294901760
        %v1147 = vsub.f32 %v1029, %v1146
        %v1148 = vand.u32 %v1147, 4294901760
        %v1149 = vsub.f32 %v1147, %v1148
        %v1150 = vand.u32 %v1149, 4294901760
        %1151 = vmatpush1.msra.mxu0 %v1150
        %v1152 = vand.u32 %v1032, 4294901760
        %v1153 = vsub.f32 %v1032, %v1152
        %v1154 = vand.u32 %v1153, 4294901760
        %v1155 = vsub.f32 %v1153, %v1154
        %v1156 = vand.u32 %v1155, 4294901760
        %1157 = vmatprep.subr.mxu0 %v1156
        %v1158 = vand.u32 %v1031, 4294901760
        %v1159 = vsub.f32 %v1031, %v1158
        %v1160 = vand.u32 %v1159, 4294901760
        %v1161 = vsub.f32 %v1159, %v1160
        %v1162 = vand.u32 %v1161, 4294901760
        %1163 = vmatpush1.msra.mxu0 %v1162
        %v1164 = vand.u32 %v1034, 4294901760
        %v1165 = vsub.f32 %v1034, %v1164
        %v1166 = vand.u32 %v1165, 4294901760
        %v1167 = vsub.f32 %v1165, %v1166
        %v1168 = vand.u32 %v1167, 4294901760
        %1169 = vmatprep.subr.mxu0 %v1168
        %v1170 = vand.u32 %v1033, 4294901760
        %v1171 = vsub.f32 %v1033, %v1170
        %v1172 = vand.u32 %v1171, 4294901760
        %v1173 = vsub.f32 %v1171, %v1172
        %v1174 = vand.u32 %v1173, 4294901760
        %1175 = vmatpush1.msra.mxu0 %v1174
        %1176 = vmatprep.subr.mxu0 0.0
        %1177 = vmatpush1.msra.mxu0 0.0
        %1178 = vmatprep.subr.mxu0 0.0
        %1179 = vmatpush1.msra.mxu0 0.0
        %1180 = vmatprep.subr.mxu0 0.0
        %1181 = vmatpush1.msra.mxu0 0.0
        %1182 = vmatprep.subr.mxu0 0.0
        %1183 = vmatpush1.msra.mxu0 0.0
        %1184 = vmatprep.subr.mxu0 0.0
        %1185 = vmatpush1.msra.mxu0 0.0
        %1186 = vmatprep.subr.mxu0 0.0
        %1187 = vmatpush1.msra.mxu0 0.0
        %1188 = vmatprep.subr.mxu0 0.0
        %1189 = vmatpush1.msra.mxu0 0.0
        %1190 = vmatprep.subr.mxu0 0.0
        %1191 = vmatpush1.msra.mxu0 0.0
        %1192 = vmatprep.subr.mxu0 0.0
        %1193 = vmatpush1.msra.mxu0 0.0
        %1194 = vmatprep.subr.mxu0 0.0
        %1195 = vmatpush1.msra.mxu0 0.0
        %1196 = vmatprep.subr.mxu0 0.0
        %1197 = vmatpush1.msra.mxu0 0.0
        %1198 = vmatprep.subr.mxu0 0.0
        %1199 = vmatpush1.msra.mxu0 0.0
        %1200 = vmatprep.subr.mxu0 0.0
        %1201 = vmatpush1.msra.mxu0 0.0
        %1202 = vmatprep.subr.mxu0 0.0
        %1203 = vmatpush1.msra.mxu0 0.0
        %1204 = vmatprep.subr.mxu0 0.0
        %1205 = vmatpush1.msra.mxu0 0.0
        %1206 = vmatprep.subr.mxu0 0.0
        %1207 = vmatpush1.msra.mxu0 0.0
        %1208 = vmatprep.subr.mxu0 0.0
        %1209 = vmatpush1.msra.mxu0 0.0
        %1210 = vmatprep.subr.mxu0 0.0
        %1211 = vmatpush1.msra.mxu0 0.0
        %1212 = vmatprep.subr.mxu0 0.0
        %1213 = vmatpush1.msra.mxu0 0.0
        %1214 = vmatprep.subr.mxu0 0.0
        %1215 = vmatpush1.msra.mxu0 0.0
        %1216 = vmatprep.subr.mxu0 0.0
        %1217 = vmatpush1.msra.mxu0 0.0
        %1218 = vmatprep.subr.mxu0 0.0
        %1219 = vmatpush1.msra.mxu0 0.0
        %1220 = vmatprep.subr.mxu0 0.0
        %1221 = vmatpush1.msra.mxu0 0.0
        %1222 = vmatprep.subr.mxu0 0.0
        %1223 = vmatpush1.msra.mxu0 0.0
        %1224 = vmatprep.subr.mxu0 0.0
        %1225 = vmatpush1.msra.mxu0 0.0
        %1226 = vmatprep.subr.mxu0 0.0
        %1227 = vmatpush1.msra.mxu0 0.0
        %1228 = vmatprep.subr.mxu0 0.0
        %1229 = vmatpush1.msra.mxu0 0.0
        %1230 = vmatprep.subr.mxu0 0.0
        %1231 = vmatpush1.msra.mxu0 0.0
        %1232 = vmatprep.mubr.f32.mxu0 0.0
        %v1233 = vand.u32 %v1042, 4294901760
        %1234 = vmatmul.mubr.f32.gmra.mrb[0].mxu0 %v1233
        %v1235 = vpop.f32.mrb[0].mxu0
        %v1236 = vadd.f32 %v1124, %v1235
        %v1237 = vpop.f32.mrb[0].mxu0
        %v1238 = vadd.f32 %v1126, %v1237
        %1239 = vdwg.mxu0
        %v1240 = vand.u32 %v1028, 4294901760
        %v1241 = vsub.f32 %v1028, %v1240
        %1242 = vmatprep.subr.mxu0 %v1241
        %v1243 = vand.u32 %v1027, 4294901760
        %v1244 = vsub.f32 %v1027, %v1243
        %1245 = vmatpush1.msra.mxu0 %v1244
        %v1246 = vand.u32 %v1030, 4294901760
        %v1247 = vsub.f32 %v1030, %v1246
        %1248 = vmatprep.subr.mxu0 %v1247
        %v1249 = vand.u32 %v1029, 4294901760
        %v1250 = vsub.f32 %v1029, %v1249
        %1251 = vmatpush1.msra.mxu0 %v1250
        %v1252 = vand.u32 %v1032, 4294901760
        %v1253 = vsub.f32 %v1032, %v1252
        %1254 = vmatprep.subr.mxu0 %v1253
        %v1255 = vand.u32 %v1031, 4294901760
        %v1256 = vsub.f32 %v1031, %v1255
        %1257 = vmatpush1.msra.mxu0 %v1256
        %v1258 = vand.u32 %v1034, 4294901760
        %v1259 = vsub.f32 %v1034, %v1258
        %1260 = vmatprep.subr.mxu0 %v1259
        %v1261 = vand.u32 %v1033, 4294901760
        %v1262 = vsub.f32 %v1033, %v1261
        %1263 = vmatpush1.msra.mxu0 %v1262
        %1264 = vmatprep.subr.mxu0 0.0
        %1265 = vmatpush1.msra.mxu0 0.0
        %1266 = vmatprep.subr.mxu0 0.0
        %1267 = vmatpush1.msra.mxu0 0.0
        %1268 = vmatprep.subr.mxu0 0.0
        %1269 = vmatpush1.msra.mxu0 0.0
        %1270 = vmatprep.subr.mxu0 0.0
        %1271 = vmatpush1.msra.mxu0 0.0
        %1272 = vmatprep.subr.mxu0 0.0
        %1273 = vmatpush1.msra.mxu0 0.0
        %1274 = vmatprep.subr.mxu0 0.0
        %1275 = vmatpush1.msra.mxu0 0.0
        %1276 = vmatprep.subr.mxu0 0.0
        %1277 = vmatpush1.msra.mxu0 0.0
        %1278 = vmatprep.subr.mxu0 0.0
        %1279 = vmatpush1.msra.mxu0 0.0
        %1280 = vmatprep.subr.mxu0 0.0
        %1281 = vmatpush1.msra.mxu0 0.0
        %1282 = vmatprep.subr.mxu0 0.0
        %1283 = vmatpush1.msra.mxu0 0.0
        %1284 = vmatprep.subr.mxu0 0.0
        %1285 = vmatpush1.msra.mxu0 0.0
        %1286 = vmatprep.subr.mxu0 0.0
        %1287 = vmatpush1.msra.mxu0 0.0
        %1288 = vmatprep.subr.mxu0 0.0
        %1289 = vmatpush1.msra.mxu0 0.0
        %1290 = vmatprep.subr.mxu0 0.0
        %1291 = vmatpush1.msra.mxu0 0.0
        %1292 = vmatprep.subr.mxu0 0.0
        %1293 = vmatpush1.msra.mxu0 0.0
        %1294 = vmatprep.subr.mxu0 0.0
        %1295 = vmatpush1.msra.mxu0 0.0
        %1296 = vmatprep.subr.mxu0 0.0
        %1297 = vmatpush1.msra.mxu0 0.0
        %1298 = vmatprep.subr.mxu0 0.0
        %1299 = vmatpush1.msra.mxu0 0.0
        %1300 = vmatprep.subr.mxu0 0.0
        %1301 = vmatpush1.msra.mxu0 0.0
        %1302 = vmatprep.subr.mxu0 0.0
        %1303 = vmatpush1.msra.mxu0 0.0
        %1304 = vmatprep.subr.mxu0 0.0
        %1305 = vmatpush1.msra.mxu0 0.0
        %1306 = vmatprep.subr.mxu0 0.0
        %1307 = vmatpush1.msra.mxu0 0.0
        %1308 = vmatprep.subr.mxu0 0.0
        %1309 = vmatpush1.msra.mxu0 0.0
        %1310 = vmatprep.subr.mxu0 0.0
        %1311 = vmatpush1.msra.mxu0 0.0
        %1312 = vmatprep.subr.mxu0 0.0
        %1313 = vmatpush1.msra.mxu0 0.0
        %1314 = vmatprep.subr.mxu0 0.0
        %1315 = vmatpush1.msra.mxu0 0.0
        %1316 = vmatprep.subr.mxu0 0.0
        %1317 = vmatpush1.msra.mxu0 0.0
        %1318 = vmatprep.subr.mxu0 0.0
        %1319 = vmatpush1.msra.mxu0 0.0
        %1320 = vmatprep.mubr.f32.mxu0 0.0
        %v1321 = vand.u32 %v1042, 4294901760
        %v1322 = vsub.f32 %v1042, %v1321
        %1323 = vmatmul.mubr.f32.gmra.mrb[0].mxu0 %v1322
        %v1324 = vpop.f32.mrb[0].mxu0
        %v1325 = vadd.f32 %v1236, %v1324
        %v1326 = vpop.f32.mrb[0].mxu0
        %v1327 = vadd.f32 %v1238, %v1326
        %1328 = vdwg.mxu0
        %v1329 = vand.u32 %v1028, 4294901760
        %1330 = vmatprep.subr.mxu0 %v1329
        %v1331 = vand.u32 %v1027, 4294901760
        %1332 = vmatpush1.msra.mxu0 %v1331
        %v1333 = vand.u32 %v1030, 4294901760
        %1334 = vmatprep.subr.mxu0 %v1333
        %v1335 = vand.u32 %v1029, 4294901760
        %1336 = vmatpush1.msra.mxu0 %v1335
        %v1337 = vand.u32 %v1032, 4294901760
        %1338 = vmatprep.subr.mxu0 %v1337
        %v1339 = vand.u32 %v1031, 4294901760
        %1340 = vmatpush1.msra.mxu0 %v1339
        %v1341 = vand.u32 %v1034, 4294901760
        %1342 = vmatprep.subr.mxu0 %v1341
        %v1343 = vand.u32 %v1033, 4294901760
        %1344 = vmatpush1.msra.mxu0 %v1343
        %1345 = vmatprep.subr.mxu0 0.0
        %1346 = vmatpush1.msra.mxu0 0.0
        %1347 = vmatprep.subr.mxu0 0.0
        %1348 = vmatpush1.msra.mxu0 0.0
        %1349 = vmatprep.subr.mxu0 0.0
        %1350 = vmatpush1.msra.mxu0 0.0
        %1351 = vmatprep.subr.mxu0 0.0
        %1352 = vmatpush1.msra.mxu0 0.0
        %1353 = vmatprep.subr.mxu0 0.0
        %1354 = vmatpush1.msra.mxu0 0.0
        %1355 = vmatprep.subr.mxu0 0.0
        %1356 = vmatpush1.msra.mxu0 0.0
        %1357 = vmatprep.subr.mxu0 0.0
        %1358 = vmatpush1.msra.mxu0 0.0
        %1359 = vmatprep.subr.mxu0 0.0
        %1360 = vmatpush1.msra.mxu0 0.0
        %1361 = vmatprep.subr.mxu0 0.0
        %1362 = vmatpush1.msra.mxu0 0.0
        %1363 = vmatprep.subr.mxu0 0.0
        %1364 = vmatpush1.msra.mxu0 0.0
        %1365 = vmatprep.subr.mxu0 0.0
        %1366 = vmatpush1.msra.mxu0 0.0
        %1367 = vmatprep.subr.mxu0 0.0
        %1368 = vmatpush1.msra.mxu0 0.0
        %1369 = vmatprep.subr.mxu0 0.0
        %1370 = vmatpush1.msra.mxu0 0.0
        %1371 = vmatprep.subr.mxu0 0.0
        %1372 = vmatpush1.msra.mxu0 0.0
        %1373 = vmatprep.subr.mxu0 0.0
        %1374 = vmatpush1.msra.mxu0 0.0
        %1375 = vmatprep.subr.mxu0 0.0
        %1376 = vmatpush1.msra.mxu0 0.0
        %1377 = vmatprep.subr.mxu0 0.0
        %1378 = vmatpush1.msra.mxu0 0.0
        %1379 = vmatprep.subr.mxu0 0.0
        %1380 = vmatpush1.msra.mxu0 0.0
        %1381 = vmatprep.subr.mxu0 0.0
        %1382 = vmatpush1.msra.mxu0 0.0
        %1383 = vmatprep.subr.mxu0 0.0
        %1384 = vmatpush1.msra.mxu0 0.0
        %1385 = vmatprep.subr.mxu0 0.0
        %1386 = vmatpush1.msra.mxu0 0.0
        %1387 = vmatprep.subr.mxu0 0.0
        %1388 = vmatpush1.msra.mxu0 0.0
        %1389 = vmatprep.subr.mxu0 0.0
        %1390 = vmatpush1.msra.mxu0 0.0
        %1391 = vmatprep.subr.mxu0 0.0
        %1392 = vmatpush1.msra.mxu0 0.0
        %1393 = vmatprep.subr.mxu0 0.0
        %1394 = vmatpush1.msra.mxu0 0.0
        %1395 = vmatprep.subr.mxu0 0.0
        %1396 = vmatpush1.msra.mxu0 0.0
        %1397 = vmatprep.subr.mxu0 0.0
        %1398 = vmatpush1.msra.mxu0 0.0
        %1399 = vmatprep.subr.mxu0 0.0
        %1400 = vmatpush1.msra.mxu0 0.0
        %1401 = vmatprep.mubr.f32.mxu0 0.0
        %v1402 = vand.u32 %v1042, 4294901760
        %v1403 = vsub.f32 %v1042, %v1402
        %v1404 = vand.u32 %v1403, 4294901760
        %1405 = vmatmul.mubr.f32.gmra.mrb[0].mxu0 %v1404
        %v1406 = vpop.f32.mrb[0].mxu0
        %v1407 = vadd.f32 %v1325, %v1406
        %v1408 = vpop.f32.mrb[0].mxu0
        %v1409 = vadd.f32 %v1327, %v1408
        %1410 = vdwg.mxu0
        %v1411 = vand.u32 %v1028, 4294901760
        %v1412 = vsub.f32 %v1028, %v1411
        %v1413 = vand.u32 %v1412, 4294901760
        %1414 = vmatprep.subr.mxu0 %v1413
        %v1415 = vand.u32 %v1027, 4294901760
        %v1416 = vsub.f32 %v1027, %v1415
        %v1417 = vand.u32 %v1416, 4294901760
        %1418 = vmatpush1.msra.mxu0 %v1417
        %v1419 = vand.u32 %v1030, 4294901760
        %v1420 = vsub.f32 %v1030, %v1419
        %v1421 = vand.u32 %v1420, 4294901760
        %1422 = vmatprep.subr.mxu0 %v1421
        %v1423 = vand.u32 %v1029, 4294901760
        %v1424 = vsub.f32 %v1029, %v1423
        %v1425 = vand.u32 %v1424, 4294901760
        %1426 = vmatpush1.msra.mxu0 %v1425
        %v1427 = vand.u32 %v1032, 4294901760
        %v1428 = vsub.f32 %v1032, %v1427
        %v1429 = vand.u32 %v1428, 4294901760
        %1430 = vmatprep.subr.mxu0 %v1429
        %v1431 = vand.u32 %v1031, 4294901760
        %v1432 = vsub.f32 %v1031, %v1431
        %v1433 = vand.u32 %v1432, 4294901760
        %1434 = vmatpush1.msra.mxu0 %v1433
        %v1435 = vand.u32 %v1034, 4294901760
        %v1436 = vsub.f32 %v1034, %v1435
        %v1437 = vand.u32 %v1436, 4294901760
        %1438 = vmatprep.subr.mxu0 %v1437
        %v1439 = vand.u32 %v1033, 4294901760
        %v1440 = vsub.f32 %v1033, %v1439
        %v1441 = vand.u32 %v1440, 4294901760
        %1442 = vmatpush1.msra.mxu0 %v1441
        %1443 = vmatprep.subr.mxu0 0.0
        %1444 = vmatpush1.msra.mxu0 0.0
        %1445 = vmatprep.subr.mxu0 0.0
        %1446 = vmatpush1.msra.mxu0 0.0
        %1447 = vmatprep.subr.mxu0 0.0
        %1448 = vmatpush1.msra.mxu0 0.0
        %1449 = vmatprep.subr.mxu0 0.0
        %1450 = vmatpush1.msra.mxu0 0.0
        %1451 = vmatprep.subr.mxu0 0.0
        %1452 = vmatpush1.msra.mxu0 0.0
        %1453 = vmatprep.subr.mxu0 0.0
        %1454 = vmatpush1.msra.mxu0 0.0
        %1455 = vmatprep.subr.mxu0 0.0
        %1456 = vmatpush1.msra.mxu0 0.0
        %1457 = vmatprep.subr.mxu0 0.0
        %1458 = vmatpush1.msra.mxu0 0.0
        %1459 = vmatprep.subr.mxu0 0.0
        %1460 = vmatpush1.msra.mxu0 0.0
        %1461 = vmatprep.subr.mxu0 0.0
        %1462 = vmatpush1.msra.mxu0 0.0
        %1463 = vmatprep.subr.mxu0 0.0
        %1464 = vmatpush1.msra.mxu0 0.0
        %1465 = vmatprep.subr.mxu0 0.0
        %1466 = vmatpush1.msra.mxu0 0.0
        %1467 = vmatprep.subr.mxu0 0.0
        %1468 = vmatpush1.msra.mxu0 0.0
        %1469 = vmatprep.subr.mxu0 0.0
        %1470 = vmatpush1.msra.mxu0 0.0
        %1471 = vmatprep.subr.mxu0 0.0
        %1472 = vmatpush1.msra.mxu0 0.0
        %1473 = vmatprep.subr.mxu0 0.0
        %1474 = vmatpush1.msra.mxu0 0.0
        %1475 = vmatprep.subr.mxu0 0.0
        %1476 = vmatpush1.msra.mxu0 0.0
        %1477 = vmatprep.subr.mxu0 0.0
        %1478 = vmatpush1.msra.mxu0 0.0
        %1479 = vmatprep.subr.mxu0 0.0
        %1480 = vmatpush1.msra.mxu0 0.0
        %1481 = vmatprep.subr.mxu0 0.0
        %1482 = vmatpush1.msra.mxu0 0.0
        %1483 = vmatprep.subr.mxu0 0.0
        %1484 = vmatpush1.msra.mxu0 0.0
        %1485 = vmatprep.subr.mxu0 0.0
        %1486 = vmatpush1.msra.mxu0 0.0
        %1487 = vmatprep.subr.mxu0 0.0
        %1488 = vmatpush1.msra.mxu0 0.0
        %1489 = vmatprep.subr.mxu0 0.0
        %1490 = vmatpush1.msra.mxu0 0.0
        %1491 = vmatprep.subr.mxu0 0.0
        %1492 = vmatpush1.msra.mxu0 0.0
        %1493 = vmatprep.subr.mxu0 0.0
        %1494 = vmatpush1.msra.mxu0 0.0
        %1495 = vmatprep.subr.mxu0 0.0
        %1496 = vmatpush1.msra.mxu0 0.0
        %1497 = vmatprep.subr.mxu0 0.0
        %1498 = vmatpush1.msra.mxu0 0.0
        %1499 = vmatprep.mubr.f32.mxu0 0.0
        %v1500 = vand.u32 %v1042, 4294901760
        %1501 = vmatmul.mubr.f32.gmra.mrb[0].mxu0 %v1500
        %v1502 = vpop.f32.mrb[0].mxu0
        %v1503 = vadd.f32 %v1407, %v1502
        %v1504 = vpop.f32.mrb[0].mxu0
        %v1505 = vadd.f32 %v1409, %v1504
        %1506 = vdwg.mxu0
        %v1507 = vand.u32 %v1028, 4294901760
        %1508 = vmatprep.subr.mxu0 %v1507
        %v1509 = vand.u32 %v1027, 4294901760
        %1510 = vmatpush1.msra.mxu0 %v1509
        %v1511 = vand.u32 %v1030, 4294901760
        %1512 = vmatprep.subr.mxu0 %v1511
        %v1513 = vand.u32 %v1029, 4294901760
        %1514 = vmatpush1.msra.mxu0 %v1513
        %v1515 = vand.u32 %v1032, 4294901760
        %1516 = vmatprep.subr.mxu0 %v1515
        %v1517 = vand.u32 %v1031, 4294901760
        %1518 = vmatpush1.msra.mxu0 %v1517
        %v1519 = vand.u32 %v1034, 4294901760
        %1520 = vmatprep.subr.mxu0 %v1519
        %v1521 = vand.u32 %v1033, 4294901760
        %1522 = vmatpush1.msra.mxu0 %v1521
        %1523 = vmatprep.subr.mxu0 0.0
        %1524 = vmatpush1.msra.mxu0 0.0
        %1525 = vmatprep.subr.mxu0 0.0
        %1526 = vmatpush1.msra.mxu0 0.0
        %1527 = vmatprep.subr.mxu0 0.0
        %1528 = vmatpush1.msra.mxu0 0.0
        %1529 = vmatprep.subr.mxu0 0.0
        %1530 = vmatpush1.msra.mxu0 0.0
        %1531 = vmatprep.subr.mxu0 0.0
        %1532 = vmatpush1.msra.mxu0 0.0
        %1533 = vmatprep.subr.mxu0 0.0
        %1534 = vmatpush1.msra.mxu0 0.0
        %1535 = vmatprep.subr.mxu0 0.0
        %1536 = vmatpush1.msra.mxu0 0.0
        %1537 = vmatprep.subr.mxu0 0.0
        %1538 = vmatpush1.msra.mxu0 0.0
        %1539 = vmatprep.subr.mxu0 0.0
        %1540 = vmatpush1.msra.mxu0 0.0
        %1541 = vmatprep.subr.mxu0 0.0
        %1542 = vmatpush1.msra.mxu0 0.0
        %1543 = vmatprep.subr.mxu0 0.0
        %1544 = vmatpush1.msra.mxu0 0.0
        %1545 = vmatprep.subr.mxu0 0.0
        %1546 = vmatpush1.msra.mxu0 0.0
        %1547 = vmatprep.subr.mxu0 0.0
        %1548 = vmatpush1.msra.mxu0 0.0
        %1549 = vmatprep.subr.mxu0 0.0
        %1550 = vmatpush1.msra.mxu0 0.0
        %1551 = vmatprep.subr.mxu0 0.0
        %1552 = vmatpush1.msra.mxu0 0.0
        %1553 = vmatprep.subr.mxu0 0.0
        %1554 = vmatpush1.msra.mxu0 0.0
        %1555 = vmatprep.subr.mxu0 0.0
        %1556 = vmatpush1.msra.mxu0 0.0
        %1557 = vmatprep.subr.mxu0 0.0
        %1558 = vmatpush1.msra.mxu0 0.0
        %1559 = vmatprep.subr.mxu0 0.0
        %1560 = vmatpush1.msra.mxu0 0.0
        %1561 = vmatprep.subr.mxu0 0.0
        %1562 = vmatpush1.msra.mxu0 0.0
        %1563 = vmatprep.subr.mxu0 0.0
        %1564 = vmatpush1.msra.mxu0 0.0
        %1565 = vmatprep.subr.mxu0 0.0
        %1566 = vmatpush1.msra.mxu0 0.0
        %1567 = vmatprep.subr.mxu0 0.0
        %1568 = vmatpush1.msra.mxu0 0.0
        %1569 = vmatprep.subr.mxu0 0.0
        %1570 = vmatpush1.msra.mxu0 0.0
        %1571 = vmatprep.subr.mxu0 0.0
        %1572 = vmatpush1.msra.mxu0 0.0
        %1573 = vmatprep.subr.mxu0 0.0
        %1574 = vmatpush1.msra.mxu0 0.0
        %1575 = vmatprep.subr.mxu0 0.0
        %1576 = vmatpush1.msra.mxu0 0.0
        %1577 = vmatprep.subr.mxu0 0.0
        %1578 = vmatpush1.msra.mxu0 0.0
        %1579 = vmatprep.mubr.f32.mxu0 0.0
        %v1580 = vand.u32 %v1042, 4294901760
        %1581 = vmatmul.mubr.f32.gmra.mrb[0].mxu0 %v1580
        %v1582 = vpop.f32.mrb[0].mxu0
        %v1583 = vadd.f32 %v1503, %v1582
        %v1584 = vpop.f32.mrb[0].mxu0
        %v1585 = vadd.f32 %v1505, %v1584
        %1586 = vdwg.mxu0
        %v1587 = vstv %s315
        %v1588 = vmul.f32 %v1587, %v1583
        %v1589 = vmul.f32 %v1587, %v1585
        %v1592 = vcombine.low %v1588, %v1589
        %v1594 = vadd.f32 %v326, %v1592
        %1595 = vst [vmem:[%s298] sm:$0xff] %v1594
        %s1596 = sand.u32 %s181, 1
        %s1597 = scalar_lea.sflag [#allocation3], %s1596
        %s1598 = sand.u32 %s181, 1
        %s1599 = smul.addr %s1598, 8
        %s1600 = scalar_lea.vmem [#allocation5], %s1599
        // Predicated region
        $region49: #{tpu_custom_call.1} parent=43 // pred_check
          %p1601 = pneg %p191
        $region50: #{tpu_custom_call.1} parent=43 // pred_check_branch
          %1603 = sbr.rel (%p1601) target = $region52
        $region51: #{tpu_custom_call.1} parent=43 // pred_region
          %s1604 = smul.u32 2, %s26
          %s1606 = ssub.s32 128, 128
          %1607 = vsyncadd %s1597, %s1606
          %s1608 = smul.addr %s25, 2
          %s1609 = sadd.s32 %s1604, %s1608
          %s1610 = smul.addr %s1609, 64
          %s1611 = scalar_lea.hbm %s6, %s1610
          %s1613 = sshll.u32 %s1600, 4
          %s1614 = int_to_ptr.vmem [resolvable:$true] %s1613
          %1616 = dma.vmem_to_hbm [thread:$0]  %s1614, 128, %s1611, %s1597
        $region52: #{tpu_custom_call.1} parent=43 // pred_fallthru
          _
      $region44: #{tpu_custom_call.1} parent=5 // pred_fallthru
        _
      %p1617 = scmp.le.s32.totalorder 2, %s16
      // Predicated region
      $region53: #{tpu_custom_call.1} parent=5 // pred_check
        %p1618 = pneg %p1617
      $region54: #{tpu_custom_call.1} parent=5 // pred_check_branch
        %1620 = sbr.rel (%p1618) target = $region56
      $region55: #{tpu_custom_call.1} parent=5 // pred_region
        %s1621 = ssub.s32 %s16, 2
        // Predicated region
        $region57: #{tpu_custom_call.1} parent=55 // pred_check
          %p1622 = pneg %p197
        $region58: #{tpu_custom_call.1} parent=55 // pred_check_branch
          %1624 = sbr.rel (%p1622) target = $region60
        $region59: #{tpu_custom_call.1} parent=55 // pred_region
          %s1625 = sand.u32 %s182, 1
          %s1626 = scalar_lea.sflag [#allocation3], %s1625
          %s1627 = sand.u32 %s182, 1
          %s1628 = smul.addr %s1627, 8
          %s1629 = scalar_lea.vmem [#allocation5], %s1628
          %1630 = dma.done %s1626, 128
        $region60: #{tpu_custom_call.1} parent=55 // pred_fallthru
          _
      $region56: #{tpu_custom_call.1} parent=5 // pred_fallthru
        _
    $region6: #{tpu_custom_call.1} parent=1 // loop_footer
      %s20 = sadd.s32 1, %s16
    $region7: #{tpu_custom_call.1} parent=1 // loop_footer_branch
      %15 = sbr.rel target = $region3
    $region8: #{tpu_custom_call.1} parent=1 // loop_exit
      _
    %1631 = vsyncpa [#allocation3], 1
    %s1632 = scalar_lea.sflag [#allocation3], 1
    %1633 = vsyncpa %s1632, 1
    %1634 = vsyncpa [#allocation4], 1
    %s1635 = scalar_lea.sflag [#allocation4], 1
    %1636 = vsyncpa %s1635, 1

</llo_original>
